<compile_context>
chip_gen: v7x
topology: tpu7x:2x2x1
jax: 0.10.0
libtpu: 0.0.40
codegen_flags: <defaults>
</compile_context>

<pallas_src>
import functools

import numpy as np
import jax
import jax.numpy as jnp
from jax import lax
from jax.experimental import pallas as pl
from jax.experimental.pallas import tpu as pltpu


_VMEM = pl.BlockSpec(memory_space=pltpu.MemorySpace.VMEM)


# ---------------------------------------------------------------------------
# Pallas kernels
# ---------------------------------------------------------------------------
def _encoder_kernel(p_ref, w_ref, b_ref, scale_ref, shift_ref, o_ref):
    """Fused conv(as matmul) + bias + ReLU + 2x2 maxpool + BatchNorm(eval).

    p_ref:  (4*R, K)  im2col patches; rows are 4 contiguous blocks of R, one
                      block per position in the 2x2 pool window.
    w_ref:  (K, C)    conv weight, K = kh*kw*Cin (zero-padded rows allowed).
    b_ref, scale_ref, shift_ref: (1, C)
    o_ref:  (R, C)    pooled + BN output, rows ordered (n, hp, wp).
    """
    z = jnp.dot(p_ref[...], w_ref[...], preferred_element_type=jnp.float32)
    r = o_ref.shape[0]
    pooled = jnp.maximum(jnp.maximum(z[0:r], z[r:2 * r]),
                         jnp.maximum(z[2 * r:3 * r], z[3 * r:4 * r]))
    y = jnp.maximum(pooled + b_ref[...], 0.0)
    o_ref[...] = y * scale_ref[...] + shift_ref[...]


def _encoder_mlp_kernel(p_ref, w_ref, b_ref, scale_ref, shift_ref,
                        a1_ref, lb1_ref, lw2_ref, lb2_ref, o_ref,
                        *, num_samples):
    """Encoder2 (conv + ReLU + pool + BN) fused with the output MLP.

    p_ref:  (4*N, S*Kp)  per (pool-position q, sample n) patch rows; each row
                         is the concat over the S output spatial positions of
                         that position's Kp-long im2col patch.
    w_ref:  (S*Kp, S*C)  block-diagonal conv2 weight -> output columns are
                         already in flattened (s, c) feature order.
    b_ref, scale_ref, shift_ref: (1, S*C)  per-channel values tiled over s.
    a1_ref: (S*C, H1)    Linear1 weight with PyTorch's NCHW flatten folded in.
    lb1_ref: (1, H1), lw2_ref: (H1, L), lb2_ref: (1, L)
    o_ref:  (N, L)
    """
    n = num_samples
    z = jnp.dot(p_ref[...], w_ref[...], preferred_element_type=jnp.float32)
    pooled = jnp.maximum(jnp.maximum(z[0:n], z[n:2 * n]),
                         jnp.maximum(z[2 * n:3 * n], z[3 * n:4 * n]))
    y = jnp.maximum(pooled + b_ref[...], 0.0) * scale_ref[...] + shift_ref[...]
    h = jnp.maximum(jnp.dot(y, a1_ref[...],
                            preferred_element_type=jnp.float32) + lb1_ref[...],
                    0.0)
    # TODO(synk): Dropout(0.1) is eval-mode identity here.
    o_ref[...] = (jnp.dot(h, lw2_ref[...], preferred_element_type=jnp.float32)
                  + lb2_ref[...])


def encoder_fused(patches, w, b, scale, shift):
    """patches (4*R, K) -> pooled+BN activations (R, C)."""
    R = patches.shape[0] // 4
    C = w.shape[1]
    return pl.pallas_call(
        _encoder_kernel,
        out_shape=jax.ShapeDtypeStruct((R, C), jnp.float32),
        in_specs=[_VMEM] * 5,
        out_specs=_VMEM,
    )(patches, w, b, scale, shift)


def encoder_mlp_fused(patches, wblk, b, scale, shift, a1, lb1, lw2, lb2):
    """patches (4*N, S*Kp) -> logits (N, L)."""
    num_samples = patches.shape[0] // 4
    L = lw2.shape[1]
    return pl.pallas_call(
        functools.partial(_encoder_mlp_kernel, num_samples=num_samples),
        out_shape=jax.ShapeDtypeStruct((num_samples, L), jnp.float32),
        in_specs=[_VMEM] * 9,
        out_specs=_VMEM,
    )(patches, wblk, b, scale, shift, a1, lb1, lw2, lb2)


# ---------------------------------------------------------------------------
# Trace-time glue: gather-index construction (numpy, constant folded)
# ---------------------------------------------------------------------------
def pooled_im2col_indices(N, H, W, C, kh, kw, sh, sw, ph, pw, k_pad_to=None):
    """Gather indices into the flattened zero-padded NHWC input implementing
    im2col for conv(kernel=(kh,kw), stride=(sh,sw), pad=(ph,pw)) followed by a
    floor-mode 2x2 maxpool.

    Returns (idx, Hp, Wp). idx has shape (4, N*Hp*Wp, Kp); axis 0 is the
    position inside the 2x2 pool window, and
      idx[q, n*Hp*Wp + hp*Wp + wp, (i*kw + j)*C + c]
    addresses x_pad[n, sh*(2*hp + q//2) + i, sw*(2*wp + q%2) + j, c].
    Padding columns (k >= kh*kw*C) point at element 0; the matching conv-weight
    rows are zero, so their value never contributes.
    """
    Hpad, Wpad = H + 2 * ph, W + 2 * pw
    Ho = (Hpad - kh) // sh + 1
    Wo = (Wpad - kw) // sw + 1
    Hp, Wp = Ho // 2, Wo // 2
    K = kh * kw * C

    qh = np.array([0, 0, 1, 1]).reshape(4, 1, 1, 1, 1, 1, 1)
    qw = np.array([0, 1, 0, 1]).reshape(4, 1, 1, 1, 1, 1, 1)
    n = np.arange(N).reshape(1, N, 1, 1, 1, 1, 1)
    hp = np.arange(Hp).reshape(1, 1, Hp, 1, 1, 1, 1)
    wp = np.arange(Wp).reshape(1, 1, 1, Wp, 1, 1, 1)
    i = np.arange(kh).reshape(1, 1, 1, 1, kh, 1, 1)
    j = np.arange(kw).reshape(1, 1, 1, 1, 1, kw, 1)
    c = np.arange(C).reshape(1, 1, 1, 1, 1, 1, C)

    h_src = sh * (2 * hp + qh) + i
    w_src = sw * (2 * wp + qw) + j
    flat = ((n * Hpad + h_src) * Wpad + w_src) * C + c
    flat = np.broadcast_to(flat, (4, N, Hp, Wp, kh, kw, C))
    idx = flat.reshape(4, N * Hp * Wp, K)
    if k_pad_to is not None and k_pad_to > K:
        pad = np.zeros((4, N * Hp * Wp, k_pad_to - K), dtype=idx.dtype)
        idx = np.concatenate([idx, pad], axis=-1)
    return idx.astype(np.int32), Hp, Wp


def _round_up(x, m):
    return ((x + m - 1) // m) * m


# ---------------------------------------------------------------------------
# Parameters
# ---------------------------------------------------------------------------
def init_params(key, num_labels, num_maps1, num_maps2,
                num_hidden_input, hidden_size):
    ks = jax.random.split(key, 16)

    def nrm(k, shape, s=0.1):
        return jax.random.normal(k, shape, jnp.float32) * s

    p = {}
    # Conv weights in PyTorch layout (Cout, Cin, KH, KW).
    p["w0"] = nrm(ks[0], (num_maps1, 1, 8, 16))
    p["b0"] = nrm(ks[1], (num_maps1,))
    p["w1"] = nrm(ks[2], (num_maps2, num_maps1, 5, 5))
    p["b1"] = nrm(ks[3], (num_maps2,))
    # BatchNorm (eval mode) params.
    p["bn0_gamma"] = 1.0 + nrm(ks[4], (num_maps1,))
    p["bn0_beta"] = nrm(ks[5], (num_maps1,))
    p["bn0_mean"] = nrm(ks[6], (num_maps1,))
    p["bn0_var"] = 1.0 + 0.1 * jnp.abs(jax.random.normal(ks[7], (num_maps1,)))
    p["bn1_gamma"] = 1.0 + nrm(ks[8], (num_maps2,))
    p["bn1_beta"] = nrm(ks[9], (num_maps2,))
    p["bn1_mean"] = nrm(ks[10], (num_maps2,))
    p["bn1_var"] = 1.0 + 0.1 * jnp.abs(jax.random.normal(ks[11], (num_maps2,)))
    # Linear layers stored as (in, out); bias (out,).
    p["lw1"] = nrm(ks[12], (num_hidden_input, hidden_size))
    p["lb1"] = nrm(ks[13], (hidden_size,))
    p["lw2"] = nrm(ks[14], (hidden_size, num_labels))
    p["lb2"] = nrm(ks[15], (num_labels,))
    return p


def prepare_params(params, eps=1e-5):
    """One-time weight re-layout for the fused kernels (done eagerly, once)."""
    c1 = params["w0"].shape[0]
    c2 = params["w1"].shape[0]
    hidden = params["lw1"].shape[1]
    s2 = params["lw1"].shape[0] // c2        # Hp2 * Wp2 spatial positions

    prep = {}
    # conv1: (Cout, Cin, kh, kw) -> (kh*kw*Cin, Cout); K = 8*16*1 = 128.
    prep["w0"] = jnp.transpose(params["w0"], (2, 3, 1, 0)).reshape(-1, c1)
    prep["b0"] = params["b0"].reshape(1, -1)
    scale0 = params["bn0_gamma"] / jnp.sqrt(params["bn0_var"] + eps)
    prep["scale0"] = scale0.reshape(1, -1)
    prep["shift0"] = (params["bn0_beta"]
                      - params["bn0_mean"] * scale0).reshape(1, -1)

    # conv2: K = 5*5*4 = 100 -> zero padded to 128, then replicated along a
    # block diagonal over the S2 output spatial positions.  The conv2 matmul
    # output is therefore already in flattened (s, c) feature order, which
    # folds PyTorch's NCHW flatten into the matmul (no in-kernel reshape).
    # NOTE: the padded weight rows MUST stay zero -- the matching gather
    # columns point at element 0 of the padded activation.
    w1 = jnp.transpose(params["w1"], (2, 3, 1, 0)).reshape(-1, c2)   # (100, C2)
    k2p = _round_up(w1.shape[0], 128)
    w1p = jnp.pad(w1, ((0, k2p - w1.shape[0]), (0, 0)))              # (128, C2)
    prep["w1blk"] = jnp.kron(jnp.eye(s2, dtype=jnp.float32), w1p)    # (S*Kp, S*C2)
    # Per-channel vectors tiled to the flattened (s, c) feature order.
    scale1 = params["bn1_gamma"] / jnp.sqrt(params["bn1_var"] + eps)
    shift1 = params["bn1_beta"] - params["bn1_mean"] * scale1
    prep["b1"] = jnp.tile(params["b1"].reshape(1, c2), (1, s2))
    prep["scale1"] = jnp.tile(scale1.reshape(1, c2), (1, s2))
    prep["shift1"] = jnp.tile(shift1.reshape(1, c2), (1, s2))

    # Linear1 with PyTorch's NCHW flatten (feature f = c*S2 + s) remapped to
    # the kernel's (s, c) order: a1[s*C2 + c, :] = lw1[c*S2 + s, :].
    prep["a1"] = jnp.transpose(params["lw1"].reshape(c2, s2, hidden),
                               (1, 0, 2)).reshape(s2 * c2, hidden)
    prep["lb1"] = params["lb1"].reshape(1, -1)
    prep["lw2"] = params["lw2"]
    prep["lb2"] = params["lb2"].reshape(1, -1)
    return prep


# ---------------------------------------------------------------------------
# Forward pass (mirrors CNN.forward, inference)
# ---------------------------------------------------------------------------
CONV1 = dict(kh=8, kw=16, sh=2, sw=2, ph=4, pw=0)
CONV2 = dict(kh=5, kw=5, sh=2, sw=1, ph=2, pw=2)


def cnn_forward(prep, x_nchw):
    N, cin, H, W = x_nchw.shape
    assert cin == 1
    c1 = prep["w0"].shape[1]
    x = x_nchw.astype(jnp.float32).reshape(N, H, W, 1)      # NHWC (Cin == 1)

    # encoder1: Conv2d(1,M1,(8,16),pad=(4,0),stride=2) + ReLU + MaxPool2 + BN
    idx1, hp1, wp1 = pooled_im2col_indices(N, H, W, 1, **CONV1,
                                           k_pad_to=prep["w0"].shape[0])
    idx1 = idx1.reshape(-1, idx1.shape[-1])                  # (4*R1, K1)
    xp = jnp.pad(x, ((0, 0), (CONV1["ph"],) * 2, (CONV1["pw"],) * 2, (0, 0)))
    patches1 = jnp.take(xp.reshape(-1), jnp.asarray(idx1), axis=0)
    y1 = encoder_fused(patches1, prep["w0"], prep["b0"],
                       prep["scale0"], prep["shift0"])       # (N*hp1*wp1, c1)

    # encoder2 + output MLP, fully fused in one kernel.
    k2p = _round_up(CONV2["kh"] * CONV2["kw"] * c1, 128)
    idx2, hp2, wp2 = pooled_im2col_indices(N, hp1, wp1, c1, **CONV2,
                                           k_pad_to=k2p)
    s2 = hp2 * wp2
    assert prep["w1blk"].shape[0] == s2 * k2p
    # Rows ordered (q, n); each row concatenates the S2 spatial patches.
    idx2 = idx2.reshape(4, N, s2, k2p).reshape(4 * N, s2 * k2p)
    y1p = jnp.pad(y1.reshape(N, hp1, wp1, c1),
                  ((0, 0), (CONV2["ph"],) * 2, (CONV2["pw"],) * 2, (0, 0)))
    patches2 = jnp.take(y1p.reshape(-1), jnp.asarray(idx2), axis=0)
    return encoder_mlp_fused(patches2, prep["w1blk"], prep["b1"],
                             prep["scale1"], prep["shift1"], prep["a1"],
                             prep["lb1"], prep["lw2"], prep["lb2"])


# ---------------------------------------------------------------------------
# Pure-JAX reference (independent path: lax.conv / reduce_window)
# ---------------------------------------------------------------------------
def reference_forward(params, x_nchw, num_hidden_input, eps=1e-5):
    dn = ("NCHW", "OIHW", "NCHW")
    prec = lax.Precision.HIGHEST

    def block(x, w, b, gamma, beta, mean, var, stride, pad):
        y = lax.conv_general_dilated(x, w, stride, pad,
                                     dimension_numbers=dn, precision=prec)
        y = jnp.maximum(y + b.reshape(1, -1, 1, 1), 0.0)
        y = lax.reduce_window(y, -jnp.inf, lax.max,
                              (1, 1, 2, 2), (1, 1, 2, 2), "VALID")
        scale = gamma / jnp.sqrt(var + eps)
        shift = beta - mean * scale
        return y * scale.reshape(1, -1, 1, 1) + shift.reshape(1, -1, 1, 1)

    x = x_nchw.astype(jnp.float32)
    y = block(x, params["w0"], params["b0"], params["bn0_gamma"],
              params["bn0_beta"], params["bn0_mean"], params["bn0_var"],
              (2, 2), ((4, 4), (0, 0)))
    y = block(y, params["w1"], params["b1"], params["bn1_gamma"],
              params["bn1_beta"], params["bn1_mean"], params["bn1_var"],
              (2, 1), ((2, 2), (2, 2)))
    y = y.reshape(-1, num_hidden_input)
    h = jnp.maximum(jnp.dot(y, params["lw1"], precision=prec)
                    + params["lb1"], 0.0)
    return jnp.dot(h, params["lw2"], precision=prec) + params["lb2"]


if __name__ == "__main__":
    # Shapes consistent with the module:
    #   input (2, 1, 40, 40) -> encoder1 -> (2, 4, 10, 6)
    #   -> encoder2 -> (2, 8, 2, 3) -> flatten 48 -> MLP -> (2, 3)
    num_labels, num_maps1, num_maps2, hidden_size = 3, 4, 8, 32
    num_hidden_input = num_maps2 * 2 * 3  # 48

    key = jax.random.PRNGKey(0)
    kx, kp = jax.random.split(key)
    x = jax.random.normal(kx, (2, 1, 40, 40), jnp.float32)
    params = init_params(kp, num_labels, num_maps1, num_maps2,
                         num_hidden_input, hidden_size)
    prep = prepare_params(params)

    fwd = jax.jit(cnn_forward)
    out = fwd(prep, x)
    jax.block_until_ready(out)

    assert out.shape == (2, num_labels)
    assert bool(jnp.all(jnp.isfinite(out)))
    ref = reference_forward(params, x, num_hidden_input)
    assert bool(jnp.allclose(out, ref, rtol=1e-2, atol=1e-2)), (
        float(jnp.max(jnp.abs(out - ref))))
    print("KERNEL_OK")
</pallas_src>

<mosaic_0001>
module attributes {stable_mosaic.version = 11 : i64} {
  func.func @_encoder_kernel(%arg0: memref<480x128xf32, #tpu.memory_space<vmem>>, %arg1: memref<128x4xf32, #tpu.memory_space<vmem>>, %arg2: memref<1x4xf32, #tpu.memory_space<vmem>>, %arg3: memref<1x4xf32, #tpu.memory_space<vmem>>, %arg4: memref<1x4xf32, #tpu.memory_space<vmem>>, %arg5: memref<120x4xf32, #tpu.memory_space<vmem>>) attributes {dimension_semantics = [], scalar_prefetch = 0 : i64, scratch_operands = 0 : i64, tpu.core_type = #tpu.core_type<tc>} {
    %c0 = arith.constant 0 : index
    %c0_0 = arith.constant 0 : index
    %0 = vector.load %arg0[%c0, %c0_0] : memref<480x128xf32, #tpu.memory_space<vmem>>, vector<480x128xf32>
    %c0_1 = arith.constant 0 : index
    %c0_2 = arith.constant 0 : index
    %1 = vector.load %arg1[%c0_1, %c0_2] : memref<128x4xf32, #tpu.memory_space<vmem>>, vector<128x4xf32>
    %cst = arith.constant dense<0.000000e+00> : vector<480x4xf32>
    %2 = tpu.matmul %0, %1, %cst {dimension_numbers = #tpu.dot_dimension_numbers<[1], [0], [0], [1], [0, 0, 1, 1], [], []>} : vector<480x128xf32>, vector<128x4xf32>, vector<480x4xf32> -> vector<480x4xf32>
    %3 = vector.extract_strided_slice %2 {offsets = [0, 0], sizes = [120, 4], strides = [1, 1]} : vector<480x4xf32> to vector<120x4xf32>
    %4 = vector.extract_strided_slice %2 {offsets = [120, 0], sizes = [120, 4], strides = [1, 1]} : vector<480x4xf32> to vector<120x4xf32>
    %5 = arith.maximumf %3, %4 : vector<120x4xf32>
    %6 = vector.extract_strided_slice %2 {offsets = [240, 0], sizes = [120, 4], strides = [1, 1]} : vector<480x4xf32> to vector<120x4xf32>
    %7 = vector.extract_strided_slice %2 {offsets = [360, 0], sizes = [120, 4], strides = [1, 1]} : vector<480x4xf32> to vector<120x4xf32>
    %8 = arith.maximumf %6, %7 : vector<120x4xf32>
    %9 = arith.maximumf %5, %8 : vector<120x4xf32>
    %c0_3 = arith.constant 0 : index
    %c0_4 = arith.constant 0 : index
    %10 = vector.load %arg2[%c0_3, %c0_4] : memref<1x4xf32, #tpu.memory_space<vmem>>, vector<1x4xf32>
    %11 = vector.broadcast %10 : vector<1x4xf32> to vector<120x4xf32>
    %12 = arith.addf %9, %11 : vector<120x4xf32>
    %cst_5 = arith.constant 0.000000e+00 : f32
    %13 = vector.broadcast %cst_5 : f32 to vector<120x4xf32>
    %14 = arith.maximumf %12, %13 : vector<120x4xf32>
    %c0_6 = arith.constant 0 : index
    %c0_7 = arith.constant 0 : index
    %15 = vector.load %arg3[%c0_6, %c0_7] : memref<1x4xf32, #tpu.memory_space<vmem>>, vector<1x4xf32>
    %16 = vector.broadcast %15 : vector<1x4xf32> to vector<120x4xf32>
    %17 = arith.mulf %14, %16 : vector<120x4xf32>
    %c0_8 = arith.constant 0 : index
    %c0_9 = arith.constant 0 : index
    %18 = vector.load %arg4[%c0_8, %c0_9] : memref<1x4xf32, #tpu.memory_space<vmem>>, vector<1x4xf32>
    %19 = vector.broadcast %18 : vector<1x4xf32> to vector<120x4xf32>
    %20 = arith.addf %17, %19 : vector<120x4xf32>
    %c0_10 = arith.constant 0 : index
    %c0_11 = arith.constant 0 : index
    %21 = vector.load %arg5[%c0_10, %c0_11] : memref<120x4xf32, #tpu.memory_space<vmem>>, vector<120x4xf32>
    tpu.vector_store %arg5[%c0_10, %c0_11], %20 {strides = array<i32>} : memref<120x4xf32, #tpu.memory_space<vmem>>, vector<120x4xf32>,
    return
  }
}

module attributes {stable_mosaic.version = 11 : i64} {
  func.func @_encoder_mlp_kernel(%arg0: memref<8x768xf32, #tpu.memory_space<vmem>>, %arg1: memref<768x48xf32, #tpu.memory_space<vmem>>, %arg2: memref<1x48xf32, #tpu.memory_space<vmem>>, %arg3: memref<1x48xf32, #tpu.memory_space<vmem>>, %arg4: memref<1x48xf32, #tpu.memory_space<vmem>>, %arg5: memref<48x32xf32, #tpu.memory_space<vmem>>, %arg6: memref<1x32xf32, #tpu.memory_space<vmem>>, %arg7: memref<32x3xf32, #tpu.memory_space<vmem>>, %arg8: memref<1x3xf32, #tpu.memory_space<vmem>>, %arg9: memref<2x3xf32, #tpu.memory_space<vmem>>) attributes {dimension_semantics = [], scalar_prefetch = 0 : i64, scratch_operands = 0 : i64, tpu.core_type = #tpu.core_type<tc>} {
    %c0 = arith.constant 0 : index
    %c0_0 = arith.constant 0 : index
    %0 = vector.load %arg0[%c0, %c0_0] : memref<8x768xf32, #tpu.memory_space<vmem>>, vector<8x768xf32>
    %c0_1 = arith.constant 0 : index
    %c0_2 = arith.constant 0 : index
    %1 = vector.load %arg1[%c0_1, %c0_2] : memref<768x48xf32, #tpu.memory_space<vmem>>, vector<768x48xf32>
    %cst = arith.constant dense<0.000000e+00> : vector<8x48xf32>
    %2 = tpu.matmul %0, %1, %cst {dimension_numbers = #tpu.dot_dimension_numbers<[1], [0], [0], [1], [0, 0, 1, 1], [], []>} : vector<8x768xf32>, vector<768x48xf32>, vector<8x48xf32> -> vector<8x48xf32>
    %3 = vector.extract_strided_slice %2 {offsets = [0, 0], sizes = [2, 48], strides = [1, 1]} : vector<8x48xf32> to vector<2x48xf32>
    %4 = vector.extract_strided_slice %2 {offsets = [2, 0], sizes = [2, 48], strides = [1, 1]} : vector<8x48xf32> to vector<2x48xf32>
    %5 = arith.maximumf %3, %4 : vector<2x48xf32>
    %6 = vector.extract_strided_slice %2 {offsets = [4, 0], sizes = [2, 48], strides = [1, 1]} : vector<8x48xf32> to vector<2x48xf32>
    %7 = vector.extract_strided_slice %2 {offsets = [6, 0], sizes = [2, 48], strides = [1, 1]} : vector<8x48xf32> to vector<2x48xf32>
    %8 = arith.maximumf %6, %7 : vector<2x48xf32>
    %9 = arith.maximumf %5, %8 : vector<2x48xf32>
    %c0_3 = arith.constant 0 : index
    %c0_4 = arith.constant 0 : index
    %10 = vector.load %arg2[%c0_3, %c0_4] : memref<1x48xf32, #tpu.memory_space<vmem>>, vector<1x48xf32>
    %11 = vector.broadcast %10 : vector<1x48xf32> to vector<2x48xf32>
    %12 = arith.addf %9, %11 : vector<2x48xf32>
    %cst_5 = arith.constant 0.000000e+00 : f32
    %13 = vector.broadcast %cst_5 : f32 to vector<2x48xf32>
    %14 = arith.maximumf %12, %13 : vector<2x48xf32>
    %c0_6 = arith.constant 0 : index
    %c0_7 = arith.constant 0 : index
    %15 = vector.load %arg3[%c0_6, %c0_7] : memref<1x48xf32, #tpu.memory_space<vmem>>, vector<1x48xf32>
    %16 = vector.broadcast %15 : vector<1x48xf32> to vector<2x48xf32>
    %17 = arith.mulf %14, %16 : vector<2x48xf32>
    %c0_8 = arith.constant 0 : index
    %c0_9 = arith.constant 0 : index
    %18 = vector.load %arg4[%c0_8, %c0_9] : memref<1x48xf32, #tpu.memory_space<vmem>>, vector<1x48xf32>
    %19 = vector.broadcast %18 : vector<1x48xf32> to vector<2x48xf32>
    %20 = arith.addf %17, %19 : vector<2x48xf32>
    %c0_10 = arith.constant 0 : index
    %c0_11 = arith.constant 0 : index
    %21 = vector.load %arg5[%c0_10, %c0_11] : memref<48x32xf32, #tpu.memory_space<vmem>>, vector<48x32xf32>
    %cst_12 = arith.constant dense<0.000000e+00> : vector<2x32xf32>
    %22 = tpu.matmul %20, %21, %cst_12 {dimension_numbers = #tpu.dot_dimension_numbers<[1], [0], [0], [1], [0, 0, 1, 1], [], []>} : vector<2x48xf32>, vector<48x32xf32>, vector<2x32xf32> -> vector<2x32xf32>
    %c0_13 = arith.constant 0 : index
    %c0_14 = arith.constant 0 : index
    %23 = vector.load %arg6[%c0_13, %c0_14] : memref<1x32xf32, #tpu.memory_space<vmem>>, vector<1x32xf32>
    %24 = vector.broadcast %23 : vector<1x32xf32> to vector<2x32xf32>
    %25 = arith.addf %22, %24 : vector<2x32xf32>
    %cst_15 = arith.constant 0.000000e+00 : f32
    %26 = vector.broadcast %cst_15 : f32 to vector<2x32xf32>
    %27 = arith.maximumf %25, %26 : vector<2x32xf32>
    %c0_16 = arith.constant 0 : index
    %c0_17 = arith.constant 0 : index
    %28 = vector.load %arg7[%c0_16, %c0_17] : memref<32x3xf32, #tpu.memory_space<vmem>>, vector<32x3xf32>
    %cst_18 = arith.constant dense<0.000000e+00> : vector<2x3xf32>
    %29 = tpu.matmul %27, %28, %cst_18 {dimension_numbers = #tpu.dot_dimension_numbers<[1], [0], [0], [1], [0, 0, 1, 1], [], []>} : vector<2x32xf32>, vector<32x3xf32>, vector<2x3xf32> -> vector<2x3xf32>
    %c0_19 = arith.constant 0 : index
    %c0_20 = arith.constant 0 : index
    %30 = vector.load %arg8[%c0_19, %c0_20] : memref<1x3xf32, #tpu.memory_space<vmem>>, vector<1x3xf32>
    %31 = vector.broadcast %30 : vector<1x3xf32> to vector<2x3xf32>
    %32 = arith.addf %29, %31 : vector<2x3xf32>
    %c0_21 = arith.constant 0 : index
    %c0_22 = arith.constant 0 : index
    %33 = vector.load %arg9[%c0_21, %c0_22] : memref<2x3xf32, #tpu.memory_space<vmem>>, vector<2x3xf32>
    tpu.vector_store %arg9[%c0_21, %c0_22], %32 {strides = array<i32>} : memref<2x3xf32, #tpu.memory_space<vmem>>, vector<2x3xf32>,
    return
  }
}

</mosaic_0001>

<llo_original>
// kernel: cnn_forward.2
$region0: #{cnn_forward.2}
  #allocation0 [shape = 'u32[]', space=smem, size = 0x4, offset = 0x4, fixed_abs, tag = 'smem constant byte address 0x4 - core index']
  #allocation1 [shape = 'u32[144,128]{1,0:T(1,128)}', space=vmem, size = 0x12000, scoped, tag = 'internal scratch']
  %s0 = inlined_call_operand.vmem [shape: f32[480,128], index: 0, kind: input, shape index: {}]
  %s1 = inlined_call_operand.vmem [shape: f32[128,4], index: 1, kind: input, shape index: {}]
  %s2 = inlined_call_operand.vmem [shape: f32[1,4], index: 2, kind: input, shape index: {}]
  %s3 = inlined_call_operand.vmem [shape: f32[1,4], index: 3, kind: input, shape index: {}]
  %s4 = inlined_call_operand.vmem [shape: f32[1,4], index: 4, kind: input, shape index: {}]
  %s5 = inlined_call_operand.vmem [shape: f32[120,4], index: 5, kind: output, shape index: {}]
  %s6 = sld [smem:[#allocation0]]
  $region30: #{cnn_forward.2} parent=0
    _
  %s8 = ssub.s32 1, %s6
  %s9 = scalar_select 0, %s8, %s6
  // Predicated region
  $region2: #{cnn_forward.2} parent=0 // pred_check
    _
  $region3: #{cnn_forward.2} parent=0 // pred_check_branch
    %11 = sbr.rel (0) target = $region5
  $region4: #{cnn_forward.2} parent=0 // pred_region
    _
  $region5: #{cnn_forward.2} parent=0 // pred_fallthru
    _
  // Predicated region
  $region6: #{cnn_forward.2} parent=0 // pred_check
    _
  $region7: #{cnn_forward.2} parent=0 // pred_check_branch
    %13 = sbr.rel (0) target = $region9
  $region8: #{cnn_forward.2} parent=0 // pred_region
    _
  $region9: #{cnn_forward.2} parent=0 // pred_fallthru
    _
  // Predicated region
  $region10: #{cnn_forward.2} parent=0 // pred_check
    _
  $region11: #{cnn_forward.2} parent=0 // pred_check_branch
    %15 = sbr.rel (0) target = $region13
  $region12: #{cnn_forward.2} parent=0 // pred_region
    _
  $region13: #{cnn_forward.2} parent=0 // pred_fallthru
    _
  // Predicated region
  $region14: #{cnn_forward.2} parent=0 // pred_check
    _
  $region15: #{cnn_forward.2} parent=0 // pred_check_branch
    %17 = sbr.rel (0) target = $region17
  $region16: #{cnn_forward.2} parent=0 // pred_region
    _
  $region17: #{cnn_forward.2} parent=0 // pred_fallthru
    _
  // Predicated region
  $region18: #{cnn_forward.2} parent=0 // pred_check
    _
  $region19: #{cnn_forward.2} parent=0 // pred_check_branch
    %19 = sbr.rel (0) target = $region21
  $region20: #{cnn_forward.2} parent=0 // pred_region
    _
  $region21: #{cnn_forward.2} parent=0 // pred_fallthru
    _
  %v20 = vld [vmem:[%s0] sm:$0xff]
  %v21 = vld [vmem:[%s0 + $0x8] sm:$0xff]
  %v22 = vld [vmem:[%s0 + $0x10] sm:$0xff]
  %v23 = vld [vmem:[%s0 + $0x18] sm:$0xff]
  %v24 = vld [vmem:[%s0 + $0x20] sm:$0xff]
  %v25 = vld [vmem:[%s0 + $0x28] sm:$0xff]
  %v26 = vld [vmem:[%s0 + $0x30] sm:$0xff]
  %v27 = vld [vmem:[%s0 + $0x38] sm:$0xff]
  %v28 = vld [vmem:[%s0 + $0x40] sm:$0xff]
  %v29 = vld [vmem:[%s0 + $0x48] sm:$0xff]
  %v30 = vld [vmem:[%s0 + $0x50] sm:$0xff]
  %v31 = vld [vmem:[%s0 + $0x58] sm:$0xff]
  %v32 = vld [vmem:[%s0 + $0x60] sm:$0xff]
  %v33 = vld [vmem:[%s0 + $0x68] sm:$0xff]
  %v34 = vld [vmem:[%s0 + $0x70] sm:$0xff]
  %v35 = vld [vmem:[%s0 + $0x78] sm:$0xff]
  %v36 = vld [vmem:[%s0 + $0x80] sm:$0xff]
  %v37 = vld [vmem:[%s0 + $0x88] sm:$0xff]
  %v38 = vld [vmem:[%s0 + $0x90] sm:$0xff]
  %v39 = vld [vmem:[%s0 + $0x98] sm:$0xff]
  %v40 = vld [vmem:[%s0 + $0xa0] sm:$0xff]
  %v41 = vld [vmem:[%s0 + $0xa8] sm:$0xff]
  %v42 = vld [vmem:[%s0 + $0xb0] sm:$0xff]
  %v43 = vld [vmem:[%s0 + $0xb8] sm:$0xff]
  %v44 = vld [vmem:[%s0 + $0xc0] sm:$0xff]
  %v45 = vld [vmem:[%s0 + $0xc8] sm:$0xff]
  %v46 = vld [vmem:[%s0 + $0xd0] sm:$0xff]
  %v47 = vld [vmem:[%s0 + $0xd8] sm:$0xff]
  %v48 = vld [vmem:[%s0 + $0xe0] sm:$0xff]
  %v49 = vld [vmem:[%s0 + $0xe8] sm:$0xff]
  %v50 = vld [vmem:[%s0 + $0xf0] sm:$0xff]
  %v51 = vld [vmem:[%s0 + $0xf8] sm:$0xff]
  %v52 = vld [vmem:[%s0 + $0x100] sm:$0xff]
  %v53 = vld [vmem:[%s0 + $0x108] sm:$0xff]
  %v54 = vld [vmem:[%s0 + $0x110] sm:$0xff]
  %v55 = vld [vmem:[%s0 + $0x118] sm:$0xff]
  %v56 = vld [vmem:[%s0 + $0x120] sm:$0xff]
  %v57 = vld [vmem:[%s0 + $0x128] sm:$0xff]
  %v58 = vld [vmem:[%s0 + $0x130] sm:$0xff]
  %v59 = vld [vmem:[%s0 + $0x138] sm:$0xff]
  %v60 = vld [vmem:[%s0 + $0x140] sm:$0xff]
  %v61 = vld [vmem:[%s0 + $0x148] sm:$0xff]
  %v62 = vld [vmem:[%s0 + $0x150] sm:$0xff]
  %v63 = vld [vmem:[%s0 + $0x158] sm:$0xff]
  %v64 = vld [vmem:[%s0 + $0x160] sm:$0xff]
  %v65 = vld [vmem:[%s0 + $0x168] sm:$0xff]
  %v66 = vld [vmem:[%s0 + $0x170] sm:$0xff]
  %v67 = vld [vmem:[%s0 + $0x178] sm:$0xff]
  %v68 = vld [vmem:[%s0 + $0x180] sm:$0xff]
  %v69 = vld [vmem:[%s0 + $0x188] sm:$0xff]
  %v70 = vld [vmem:[%s0 + $0x190] sm:$0xff]
  %v71 = vld [vmem:[%s0 + $0x198] sm:$0xff]
  %v72 = vld [vmem:[%s0 + $0x1a0] sm:$0xff]
  %v73 = vld [vmem:[%s0 + $0x1a8] sm:$0xff]
  %v74 = vld [vmem:[%s0 + $0x1b0] sm:$0xff]
  %v75 = vld [vmem:[%s0 + $0x1b8] sm:$0xff]
  %v76 = vld [vmem:[%s0 + $0x1c0] sm:$0xff]
  %v77 = vld [vmem:[%s0 + $0x1c8] sm:$0xff]
  %v78 = vld [vmem:[%s0 + $0x1d0] sm:$0xff]
  %v79 = vld [vmem:[%s0 + $0x1d8] sm:$0xff]
  %v80 = vld [vmem:[%s1] sm:$0xff]
  %v81 = vld [vmem:[%s1 + $0x8] sm:$0xff]
  %v82 = vld [vmem:[%s1 + $0x10] sm:$0xff]
  %v83 = vld [vmem:[%s1 + $0x18] sm:$0xff]
  %v84 = vld [vmem:[%s1 + $0x20] sm:$0xff]
  %v85 = vld [vmem:[%s1 + $0x28] sm:$0xff]
  %v86 = vld [vmem:[%s1 + $0x30] sm:$0xff]
  %v87 = vld [vmem:[%s1 + $0x38] sm:$0xff]
  %v88 = vld [vmem:[%s1 + $0x40] sm:$0xff]
  %v89 = vld [vmem:[%s1 + $0x48] sm:$0xff]
  %v90 = vld [vmem:[%s1 + $0x50] sm:$0xff]
  %v91 = vld [vmem:[%s1 + $0x58] sm:$0xff]
  %v92 = vld [vmem:[%s1 + $0x60] sm:$0xff]
  %v93 = vld [vmem:[%s1 + $0x68] sm:$0xff]
  %v94 = vld [vmem:[%s1 + $0x70] sm:$0xff]
  %v95 = vld [vmem:[%s1 + $0x78] sm:$0xff]
  %96 = vmatprep.subr.mxu0 0.0
  %97 = vmatpush1.msra.mxu0 %v80
  %98 = vmatprep.subr.mxu0 0.0
  %99 = vmatpush1.msra.mxu0 %v81
  %100 = vmatprep.subr.mxu0 0.0
  %101 = vmatpush1.msra.mxu0 %v82
  %102 = vmatprep.subr.mxu0 0.0
  %103 = vmatpush1.msra.mxu0 %v83
  %104 = vmatprep.subr.mxu0 0.0
  %105 = vmatpush1.msra.mxu0 %v84
  %106 = vmatprep.subr.mxu0 0.0
  %107 = vmatpush1.msra.mxu0 %v85
  %108 = vmatprep.subr.mxu0 0.0
  %109 = vmatpush1.msra.mxu0 %v86
  %110 = vmatprep.subr.mxu0 0.0
  %111 = vmatpush1.msra.mxu0 %v87
  %112 = vmatprep.subr.mxu0 0.0
  %113 = vmatpush1.msra.mxu0 %v88
  %114 = vmatprep.subr.mxu0 0.0
  %115 = vmatpush1.msra.mxu0 %v89
  %116 = vmatprep.subr.mxu0 0.0
  %117 = vmatpush1.msra.mxu0 %v90
  %118 = vmatprep.subr.mxu0 0.0
  %119 = vmatpush1.msra.mxu0 %v91
  %120 = vmatprep.subr.mxu0 0.0
  %121 = vmatpush1.msra.mxu0 %v92
  %122 = vmatprep.subr.mxu0 0.0
  %123 = vmatpush1.msra.mxu0 %v93
  %124 = vmatprep.subr.mxu0 0.0
  %125 = vmatpush1.msra.mxu0 %v94
  %126 = vmatprep.subr.mxu0 0.0
  %127 = vmatpush1.msra.mxu0 %v95
  %128 = vmatprep.subr.mxu0 0.0
  %129 = vmatpush1.msra.mxu0 0.0
  %130 = vmatprep.subr.mxu0 0.0
  %131 = vmatpush1.msra.mxu0 0.0
  %132 = vmatprep.subr.mxu0 0.0
  %133 = vmatpush1.msra.mxu0 0.0
  %134 = vmatprep.subr.mxu0 0.0
  %135 = vmatpush1.msra.mxu0 0.0
  %136 = vmatprep.subr.mxu0 0.0
  %137 = vmatpush1.msra.mxu0 0.0
  %138 = vmatprep.subr.mxu0 0.0
  %139 = vmatpush1.msra.mxu0 0.0
  %140 = vmatprep.subr.mxu0 0.0
  %141 = vmatpush1.msra.mxu0 0.0
  %142 = vmatprep.subr.mxu0 0.0
  %143 = vmatpush1.msra.mxu0 0.0
  %144 = vmatprep.subr.mxu0 0.0
  %145 = vmatpush1.msra.mxu0 0.0
  %146 = vmatprep.subr.mxu0 0.0
  %147 = vmatpush1.msra.mxu0 0.0
  %148 = vmatprep.subr.mxu0 0.0
  %149 = vmatpush1.msra.mxu0 0.0
  %150 = vmatprep.subr.mxu0 0.0
  %151 = vmatpush1.msra.mxu0 0.0
  %152 = vmatprep.subr.mxu0 0.0
  %153 = vmatpush1.msra.mxu0 0.0
  %154 = vmatprep.subr.mxu0 0.0
  %155 = vmatpush1.msra.mxu0 0.0
  %156 = vmatprep.subr.mxu0 0.0
  %157 = vmatpush1.msra.mxu0 0.0
  %158 = vmatprep.subr.mxu0 0.0
  %159 = vmatpush1.msra.mxu0 0.0
  %160 = vmatprep.mubr.f32.mxu0 0.0
  %161 = vmatmul.mubr.f32.gmra.mrb[0].mxu0 %v20
  %v162 = vpop.f32.mrb[0].mxu0
  %v163 = vadd.f32 0.0, %v162
  %v164 = vpop.f32.mrb[0].mxu0
  %165 = vmatprep.mubr.f32.mxu0 0.0
  %166 = vmatmul.mubr.f32.gmra.mrb[0].mxu0 %v21
  %v167 = vpop.f32.mrb[0].mxu0
  %v168 = vadd.f32 0.0, %v167
  %v169 = vpop.f32.mrb[0].mxu0
  %170 = vmatprep.mubr.f32.mxu0 0.0
  %171 = vmatmul.mubr.f32.gmra.mrb[0].mxu0 %v22
  %v172 = vpop.f32.mrb[0].mxu0
  %v173 = vadd.f32 0.0, %v172
  %v174 = vpop.f32.mrb[0].mxu0
  %175 = vmatprep.mubr.f32.mxu0 0.0
  %176 = vmatmul.mubr.f32.gmra.mrb[0].mxu0 %v23
  %v177 = vpop.f32.mrb[0].mxu0
  %v178 = vadd.f32 0.0, %v177
  %v179 = vpop.f32.mrb[0].mxu0
  %180 = vmatprep.mubr.f32.mxu0 0.0
  %181 = vmatmul.mubr.f32.gmra.mrb[0].mxu0 %v24
  %v182 = vpop.f32.mrb[0].mxu0
  %v183 = vadd.f32 0.0, %v182
  %v184 = vpop.f32.mrb[0].mxu0
  %185 = vmatprep.mubr.f32.mxu0 0.0
  %186 = vmatmul.mubr.f32.gmra.mrb[0].mxu0 %v25
  %v187 = vpop.f32.mrb[0].mxu0
  %v188 = vadd.f32 0.0, %v187
  %v189 = vpop.f32.mrb[0].mxu0
  %190 = vmatprep.mubr.f32.mxu0 0.0
  %191 = vmatmul.mubr.f32.gmra.mrb[0].mxu0 %v26
  %v192 = vpop.f32.mrb[0].mxu0
  %v193 = vadd.f32 0.0, %v192
  %v194 = vpop.f32.mrb[0].mxu0
  %195 = vmatprep.mubr.f32.mxu0 0.0
  %196 = vmatmul.mubr.f32.gmra.mrb[0].mxu0 %v27
  %v197 = vpop.f32.mrb[0].mxu0
  %v198 = vadd.f32 0.0, %v197
  %v199 = vpop.f32.mrb[0].mxu0
  %200 = vmatprep.mubr.f32.mxu0 0.0
  %201 = vmatmul.mubr.f32.gmra.mrb[0].mxu0 %v28
  %v202 = vpop.f32.mrb[0].mxu0
  %v203 = vadd.f32 0.0, %v202
  %v204 = vpop.f32.mrb[0].mxu0
  %205 = vmatprep.mubr.f32.mxu0 0.0
  %206 = vmatmul.mubr.f32.gmra.mrb[0].mxu0 %v29
  %v207 = vpop.f32.mrb[0].mxu0
  %v208 = vadd.f32 0.0, %v207
  %v209 = vpop.f32.mrb[0].mxu0
  %210 = vmatprep.mubr.f32.mxu0 0.0
  %211 = vmatmul.mubr.f32.gmra.mrb[0].mxu0 %v30
  %v212 = vpop.f32.mrb[0].mxu0
  %v213 = vadd.f32 0.0, %v212
  %v214 = vpop.f32.mrb[0].mxu0
  %215 = vmatprep.mubr.f32.mxu0 0.0
  %216 = vmatmul.mubr.f32.gmra.mrb[0].mxu0 %v31
  %v217 = vpop.f32.mrb[0].mxu0
  %v218 = vadd.f32 0.0, %v217
  %v219 = vpop.f32.mrb[0].mxu0
  %220 = vmatprep.mubr.f32.mxu0 0.0
  %221 = vmatmul.mubr.f32.gmra.mrb[0].mxu0 %v32
  %v222 = vpop.f32.mrb[0].mxu0
  %v223 = vadd.f32 0.0, %v222
  %v224 = vpop.f32.mrb[0].mxu0
  %225 = vmatprep.mubr.f32.mxu0 0.0
  %226 = vmatmul.mubr.f32.gmra.mrb[0].mxu0 %v33
  %v227 = vpop.f32.mrb[0].mxu0
  %v228 = vadd.f32 0.0, %v227
  %v229 = vpop.f32.mrb[0].mxu0
  %230 = vmatprep.mubr.f32.mxu0 0.0
  %231 = vmatmul.mubr.f32.gmra.mrb[0].mxu0 %v34
  %v232 = vpop.f32.mrb[0].mxu0
  %v233 = vadd.f32 0.0, %v232
  %v234 = vpop.f32.mrb[0].mxu0
  %235 = vmatprep.mubr.f32.mxu0 0.0
  %236 = vmatmul.mubr.f32.gmra.mrb[0].mxu0 %v35
  %v237 = vpop.f32.mrb[0].mxu0
  %v238 = vadd.f32 0.0, %v237
  %v239 = vpop.f32.mrb[0].mxu0
  %240 = vmatprep.mubr.f32.mxu0 0.0
  %241 = vmatmul.mubr.f32.gmra.mrb[0].mxu0 %v36
  %v242 = vpop.f32.mrb[0].mxu0
  %v243 = vadd.f32 0.0, %v242
  %v244 = vpop.f32.mrb[0].mxu0
  %245 = vmatprep.mubr.f32.mxu0 0.0
  %246 = vmatmul.mubr.f32.gmra.mrb[0].mxu0 %v37
  %v247 = vpop.f32.mrb[0].mxu0
  %v248 = vadd.f32 0.0, %v247
  %v249 = vpop.f32.mrb[0].mxu0
  %250 = vmatprep.mubr.f32.mxu0 0.0
  %251 = vmatmul.mubr.f32.gmra.mrb[0].mxu0 %v38
  %v252 = vpop.f32.mrb[0].mxu0
  %v253 = vadd.f32 0.0, %v252
  %v254 = vpop.f32.mrb[0].mxu0
  %255 = vmatprep.mubr.f32.mxu0 0.0
  %256 = vmatmul.mubr.f32.gmra.mrb[0].mxu0 %v39
  %v257 = vpop.f32.mrb[0].mxu0
  %v258 = vadd.f32 0.0, %v257
  %v259 = vpop.f32.mrb[0].mxu0
  %260 = vmatprep.mubr.f32.mxu0 0.0
  %261 = vmatmul.mubr.f32.gmra.mrb[0].mxu0 %v40
  %v262 = vpop.f32.mrb[0].mxu0
  %v263 = vadd.f32 0.0, %v262
  %v264 = vpop.f32.mrb[0].mxu0
  %265 = vmatprep.mubr.f32.mxu0 0.0
  %266 = vmatmul.mubr.f32.gmra.mrb[0].mxu0 %v41
  %v267 = vpop.f32.mrb[0].mxu0
  %v268 = vadd.f32 0.0, %v267
  %v269 = vpop.f32.mrb[0].mxu0
  %270 = vmatprep.mubr.f32.mxu0 0.0
  %271 = vmatmul.mubr.f32.gmra.mrb[0].mxu0 %v42
  %v272 = vpop.f32.mrb[0].mxu0
  %v273 = vadd.f32 0.0, %v272
  %v274 = vpop.f32.mrb[0].mxu0
  %275 = vmatprep.mubr.f32.mxu0 0.0
  %276 = vmatmul.mubr.f32.gmra.mrb[0].mxu0 %v43
  %v277 = vpop.f32.mrb[0].mxu0
  %v278 = vadd.f32 0.0, %v277
  %v279 = vpop.f32.mrb[0].mxu0
  %280 = vmatprep.mubr.f32.mxu0 0.0
  %281 = vmatmul.mubr.f32.gmra.mrb[0].mxu0 %v44
  %v282 = vpop.f32.mrb[0].mxu0
  %v283 = vadd.f32 0.0, %v282
  %v284 = vpop.f32.mrb[0].mxu0
  %285 = vmatprep.mubr.f32.mxu0 0.0
  %286 = vmatmul.mubr.f32.gmra.mrb[0].mxu0 %v45
  %v287 = vpop.f32.mrb[0].mxu0
  %v288 = vadd.f32 0.0, %v287
  %v289 = vpop.f32.mrb[0].mxu0
  %290 = vmatprep.mubr.f32.mxu0 0.0
  %291 = vmatmul.mubr.f32.gmra.mrb[0].mxu0 %v46
  %v292 = vpop.f32.mrb[0].mxu0
  %v293 = vadd.f32 0.0, %v292
  %v294 = vpop.f32.mrb[0].mxu0
  %295 = vmatprep.mubr.f32.mxu0 0.0
  %296 = vmatmul.mubr.f32.gmra.mrb[0].mxu0 %v47
  %v297 = vpop.f32.mrb[0].mxu0
  %v298 = vadd.f32 0.0, %v297
  %v299 = vpop.f32.mrb[0].mxu0
  %300 = vmatprep.mubr.f32.mxu0 0.0
  %301 = vmatmul.mubr.f32.gmra.mrb[0].mxu0 %v48
  %v302 = vpop.f32.mrb[0].mxu0
  %v303 = vadd.f32 0.0, %v302
  %v304 = vpop.f32.mrb[0].mxu0
  %305 = vmatprep.mubr.f32.mxu0 0.0
  %306 = vmatmul.mubr.f32.gmra.mrb[0].mxu0 %v49
  %v307 = vpop.f32.mrb[0].mxu0
  %v308 = vadd.f32 0.0, %v307
  %v309 = vpop.f32.mrb[0].mxu0
  %310 = vmatprep.mubr.f32.mxu0 0.0
  %311 = vmatmul.mubr.f32.gmra.mrb[0].mxu0 %v50
  %v312 = vpop.f32.mrb[0].mxu0
  %v313 = vadd.f32 0.0, %v312
  %v314 = vpop.f32.mrb[0].mxu0
  %315 = vmatprep.mubr.f32.mxu0 0.0
  %316 = vmatmul.mubr.f32.gmra.mrb[0].mxu0 %v51
  %v317 = vpop.f32.mrb[0].mxu0
  %v318 = vadd.f32 0.0, %v317
  %v319 = vpop.f32.mrb[0].mxu0
  %320 = vmatprep.mubr.f32.mxu0 0.0
  %321 = vmatmul.mubr.f32.gmra.mrb[0].mxu0 %v52
  %v322 = vpop.f32.mrb[0].mxu0
  %v323 = vadd.f32 0.0, %v322
  %v324 = vpop.f32.mrb[0].mxu0
  %325 = vmatprep.mubr.f32.mxu0 0.0
  %326 = vmatmul.mubr.f32.gmra.mrb[0].mxu0 %v53
  %v327 = vpop.f32.mrb[0].mxu0
  %v328 = vadd.f32 0.0, %v327
  %v329 = vpop.f32.mrb[0].mxu0
  %330 = vmatprep.mubr.f32.mxu0 0.0
  %331 = vmatmul.mubr.f32.gmra.mrb[0].mxu0 %v54
  %v332 = vpop.f32.mrb[0].mxu0
  %v333 = vadd.f32 0.0, %v332
  %v334 = vpop.f32.mrb[0].mxu0
  %335 = vmatprep.mubr.f32.mxu0 0.0
  %336 = vmatmul.mubr.f32.gmra.mrb[0].mxu0 %v55
  %v337 = vpop.f32.mrb[0].mxu0
  %v338 = vadd.f32 0.0, %v337
  %v339 = vpop.f32.mrb[0].mxu0
  %340 = vmatprep.mubr.f32.mxu0 0.0
  %341 = vmatmul.mubr.f32.gmra.mrb[0].mxu0 %v56
  %v342 = vpop.f32.mrb[0].mxu0
  %v343 = vadd.f32 0.0, %v342
  %v344 = vpop.f32.mrb[0].mxu0
  %345 = vmatprep.mubr.f32.mxu0 0.0
  %346 = vmatmul.mubr.f32.gmra.mrb[0].mxu0 %v57
  %v347 = vpop.f32.mrb[0].mxu0
  %v348 = vadd.f32 0.0, %v347
  %v349 = vpop.f32.mrb[0].mxu0
  %350 = vmatprep.mubr.f32.mxu0 0.0
  %351 = vmatmul.mubr.f32.gmra.mrb[0].mxu0 %v58
  %v352 = vpop.f32.mrb[0].mxu0
  %v353 = vadd.f32 0.0, %v352
  %v354 = vpop.f32.mrb[0].mxu0
  %355 = vmatprep.mubr.f32.mxu0 0.0
  %356 = vmatmul.mubr.f32.gmra.mrb[0].mxu0 %v59
  %v357 = vpop.f32.mrb[0].mxu0
  %v358 = vadd.f32 0.0, %v357
  %v359 = vpop.f32.mrb[0].mxu0
  %360 = vmatprep.mubr.f32.mxu0 0.0
  %361 = vmatmul.mubr.f32.gmra.mrb[0].mxu0 %v60
  %v362 = vpop.f32.mrb[0].mxu0
  %v363 = vadd.f32 0.0, %v362
  %v364 = vpop.f32.mrb[0].mxu0
  %365 = vmatprep.mubr.f32.mxu0 0.0
  %366 = vmatmul.mubr.f32.gmra.mrb[0].mxu0 %v61
  %v367 = vpop.f32.mrb[0].mxu0
  %v368 = vadd.f32 0.0, %v367
  %v369 = vpop.f32.mrb[0].mxu0
  %370 = vmatprep.mubr.f32.mxu0 0.0
  %371 = vmatmul.mubr.f32.gmra.mrb[0].mxu0 %v62
  %v372 = vpop.f32.mrb[0].mxu0
  %v373 = vadd.f32 0.0, %v372
  %v374 = vpop.f32.mrb[0].mxu0
  %375 = vmatprep.mubr.f32.mxu0 0.0
  %376 = vmatmul.mubr.f32.gmra.mrb[0].mxu0 %v63
  %v377 = vpop.f32.mrb[0].mxu0
  %v378 = vadd.f32 0.0, %v377
  %v379 = vpop.f32.mrb[0].mxu0
  %380 = vmatprep.mubr.f32.mxu0 0.0
  %381 = vmatmul.mubr.f32.gmra.mrb[0].mxu0 %v64
  %v382 = vpop.f32.mrb[0].mxu0
  %v383 = vadd.f32 0.0, %v382
  %v384 = vpop.f32.mrb[0].mxu0
  %385 = vmatprep.mubr.f32.mxu0 0.0
  %386 = vmatmul.mubr.f32.gmra.mrb[0].mxu0 %v65
  %v387 = vpop.f32.mrb[0].mxu0
  %v388 = vadd.f32 0.0, %v387
  %v389 = vpop.f32.mrb[0].mxu0
  %390 = vmatprep.mubr.f32.mxu0 0.0
  %391 = vmatmul.mubr.f32.gmra.mrb[0].mxu0 %v66
  %v392 = vpop.f32.mrb[0].mxu0
  %v393 = vadd.f32 0.0, %v392
  %v394 = vpop.f32.mrb[0].mxu0
  %395 = vmatprep.mubr.f32.mxu0 0.0
  %396 = vmatmul.mubr.f32.gmra.mrb[0].mxu0 %v67
  %v397 = vpop.f32.mrb[0].mxu0
  %v398 = vadd.f32 0.0, %v397
  %v399 = vpop.f32.mrb[0].mxu0
  %400 = vmatprep.mubr.f32.mxu0 0.0
  %401 = vmatmul.mubr.f32.gmra.mrb[0].mxu0 %v68
  %v402 = vpop.f32.mrb[0].mxu0
  %v403 = vadd.f32 0.0, %v402
  %v404 = vpop.f32.mrb[0].mxu0
  %405 = vmatprep.mubr.f32.mxu0 0.0
  %406 = vmatmul.mubr.f32.gmra.mrb[0].mxu0 %v69
  %v407 = vpop.f32.mrb[0].mxu0
  %v408 = vadd.f32 0.0, %v407
  %v409 = vpop.f32.mrb[0].mxu0
  %410 = vmatprep.mubr.f32.mxu0 0.0
  %411 = vmatmul.mubr.f32.gmra.mrb[0].mxu0 %v70
  %v412 = vpop.f32.mrb[0].mxu0
  %v413 = vadd.f32 0.0, %v412
  %v414 = vpop.f32.mrb[0].mxu0
  %415 = vmatprep.mubr.f32.mxu0 0.0
  %416 = vmatmul.mubr.f32.gmra.mrb[0].mxu0 %v71
  %v417 = vpop.f32.mrb[0].mxu0
  %v418 = vadd.f32 0.0, %v417
  %v419 = vpop.f32.mrb[0].mxu0
  %420 = vmatprep.mubr.f32.mxu0 0.0
  %421 = vmatmul.mubr.f32.gmra.mrb[0].mxu0 %v72
  %v422 = vpop.f32.mrb[0].mxu0
  %v423 = vadd.f32 0.0, %v422
  %v424 = vpop.f32.mrb[0].mxu0
  %425 = vmatprep.mubr.f32.mxu0 0.0
  %426 = vmatmul.mubr.f32.gmra.mrb[0].mxu0 %v73
  %v427 = vpop.f32.mrb[0].mxu0
  %v428 = vadd.f32 0.0, %v427
  %v429 = vpop.f32.mrb[0].mxu0
  %430 = vmatprep.mubr.f32.mxu0 0.0
  %431 = vmatmul.mubr.f32.gmra.mrb[0].mxu0 %v74
  %v432 = vpop.f32.mrb[0].mxu0
  %v433 = vadd.f32 0.0, %v432
  %v434 = vpop.f32.mrb[0].mxu0
  %435 = vmatprep.mubr.f32.mxu0 0.0
  %436 = vmatmul.mubr.f32.gmra.mrb[0].mxu0 %v75
  %v437 = vpop.f32.mrb[0].mxu0
  %v438 = vadd.f32 0.0, %v437
  %v439 = vpop.f32.mrb[0].mxu0
  %440 = vmatprep.mubr.f32.mxu0 0.0
  %441 = vmatmul.mubr.f32.gmra.mrb[0].mxu0 %v76
  %v442 = vpop.f32.mrb[0].mxu0
  %v443 = vadd.f32 0.0, %v442
  %v444 = vpop.f32.mrb[0].mxu0
  %445 = vmatprep.mubr.f32.mxu0 0.0
  %446 = vmatmul.mubr.f32.gmra.mrb[0].mxu0 %v77
  %v447 = vpop.f32.mrb[0].mxu0
  %v448 = vadd.f32 0.0, %v447
  %v449 = vpop.f32.mrb[0].mxu0
  %450 = vmatprep.mubr.f32.mxu0 0.0
  %451 = vmatmul.mubr.f32.gmra.mrb[0].mxu0 %v78
  %v452 = vpop.f32.mrb[0].mxu0
  %v453 = vadd.f32 0.0, %v452
  %v454 = vpop.f32.mrb[0].mxu0
  %455 = vmatprep.mubr.f32.mxu0 0.0
  %456 = vmatmul.mubr.f32.gmra.mrb[0].mxu0 %v79
  %v457 = vpop.f32.mrb[0].mxu0
  %v458 = vadd.f32 0.0, %v457
  %v459 = vpop.f32.mrb[0].mxu0
  %460 = vdwg.mxu0
  %v461 = vmax.f32 %v163, %v238
  %v462 = vmax.f32 %v168, %v243
  %v463 = vmax.f32 %v173, %v248
  %v464 = vmax.f32 %v178, %v253
  %v465 = vmax.f32 %v183, %v258
  %v466 = vmax.f32 %v188, %v263
  %v467 = vmax.f32 %v193, %v268
  %v468 = vmax.f32 %v198, %v273
  %v469 = vmax.f32 %v203, %v278
  %v470 = vmax.f32 %v208, %v283
  %v471 = vmax.f32 %v213, %v288
  %v472 = vmax.f32 %v218, %v293
  %v473 = vmax.f32 %v223, %v298
  %v474 = vmax.f32 %v228, %v303
  %v475 = vmax.f32 %v233, %v308
  %v476 = vmax.f32 %v313, %v388
  %v477 = vmax.f32 %v318, %v393
  %v478 = vmax.f32 %v323, %v398
  %v479 = vmax.f32 %v328, %v403
  %v480 = vmax.f32 %v333, %v408
  %v481 = vmax.f32 %v338, %v413
  %v482 = vmax.f32 %v343, %v418
  %v483 = vmax.f32 %v348, %v423
  %v484 = vmax.f32 %v353, %v428
  %v485 = vmax.f32 %v358, %v433
  %v486 = vmax.f32 %v363, %v438
  %v487 = vmax.f32 %v368, %v443
  %v488 = vmax.f32 %v373, %v448
  %v489 = vmax.f32 %v378, %v453
  %v490 = vmax.f32 %v383, %v458
  %v491 = vmax.f32 %v461, %v476
  %v492 = vmax.f32 %v462, %v477
  %v493 = vmax.f32 %v463, %v478
  %v494 = vmax.f32 %v464, %v479
  %v495 = vmax.f32 %v465, %v480
  %v496 = vmax.f32 %v466, %v481
  %v497 = vmax.f32 %v467, %v482
  %v498 = vmax.f32 %v468, %v483
  %v499 = vmax.f32 %v469, %v484
  %v500 = vmax.f32 %v470, %v485
  %v501 = vmax.f32 %v471, %v486
  %v502 = vmax.f32 %v472, %v487
  %v503 = vmax.f32 %v473, %v488
  %v504 = vmax.f32 %v474, %v489
  %v505 = vmax.f32 %v475, %v490
  %v506 = vld [vmem:[%s2] sm:$0x1]
  %v508 = vlaneseq
  %v509 = vshrl.u32 %v508, 7
  %v510 = vsub.s32 0, %v509
  %v511 = vrot.slane %v506, %v510
  %v513 = vadd.f32 %v491, %v511
  %v514 = vadd.f32 %v492, %v511
  %v515 = vadd.f32 %v493, %v511
  %v516 = vadd.f32 %v494, %v511
  %v517 = vadd.f32 %v495, %v511
  %v518 = vadd.f32 %v496, %v511
  %v519 = vadd.f32 %v497, %v511
  %v520 = vadd.f32 %v498, %v511
  %v521 = vadd.f32 %v499, %v511
  %v522 = vadd.f32 %v500, %v511
  %v523 = vadd.f32 %v501, %v511
  %v524 = vadd.f32 %v502, %v511
  %v525 = vadd.f32 %v503, %v511
  %v526 = vadd.f32 %v504, %v511
  %v527 = vadd.f32 %v505, %v511
  %v528 = vmax.f32 %v513, 0.0
  %v529 = vmax.f32 %v514, 0.0
  %v530 = vmax.f32 %v515, 0.0
  %v531 = vmax.f32 %v516, 0.0
  %v532 = vmax.f32 %v517, 0.0
  %v533 = vmax.f32 %v518, 0.0
  %v534 = vmax.f32 %v519, 0.0
  %v535 = vmax.f32 %v520, 0.0
  %v536 = vmax.f32 %v521, 0.0
  %v537 = vmax.f32 %v522, 0.0
  %v538 = vmax.f32 %v523, 0.0
  %v539 = vmax.f32 %v524, 0.0
  %v540 = vmax.f32 %v525, 0.0
  %v541 = vmax.f32 %v526, 0.0
  %v542 = vmax.f32 %v527, 0.0
  %v543 = vld [vmem:[%s3] sm:$0x1]
  %v545 = vlaneseq
  %v546 = vshrl.u32 %v545, 7
  %v547 = vsub.s32 0, %v546
  %v548 = vrot.slane %v543, %v547
  %v550 = vmul.f32 %v528, %v548
  %v551 = vmul.f32 %v529, %v548
  %v552 = vmul.f32 %v530, %v548
  %v553 = vmul.f32 %v531, %v548
  %v554 = vmul.f32 %v532, %v548
  %v555 = vmul.f32 %v533, %v548
  %v556 = vmul.f32 %v534, %v548
  %v557 = vmul.f32 %v535, %v548
  %v558 = vmul.f32 %v536, %v548
  %v559 = vmul.f32 %v537, %v548
  %v560 = vmul.f32 %v538, %v548
  %v561 = vmul.f32 %v539, %v548
  %v562 = vmul.f32 %v540, %v548
  %v563 = vmul.f32 %v541, %v548
  %v564 = vmul.f32 %v542, %v548
  %v565 = vld [vmem:[%s4] sm:$0x1]
  %v567 = vlaneseq
  %v568 = vshrl.u32 %v567, 7
  %v569 = vsub.s32 0, %v568
  %v570 = vrot.slane %v565, %v569
  %v572 = vadd.f32 %v550, %v570
  %v573 = vadd.f32 %v551, %v570
  %v574 = vadd.f32 %v552, %v570
  %v575 = vadd.f32 %v553, %v570
  %v576 = vadd.f32 %v554, %v570
  %v577 = vadd.f32 %v555, %v570
  %v578 = vadd.f32 %v556, %v570
  %v579 = vadd.f32 %v557, %v570
  %v580 = vadd.f32 %v558, %v570
  %v581 = vadd.f32 %v559, %v570
  %v582 = vadd.f32 %v560, %v570
  %v583 = vadd.f32 %v561, %v570
  %v584 = vadd.f32 %v562, %v570
  %v585 = vadd.f32 %v563, %v570
  %v586 = vadd.f32 %v564, %v570
  %vm587 = vcmask 31744
  %588 = vst.msk [vmem:[%s5] sm:$0xff] %vm587, %v572
  %589 = vst.msk [vmem:[%s5 + $0x8] sm:$0xff] %vm587, %v573
  %590 = vst.msk [vmem:[%s5 + $0x10] sm:$0xff] %vm587, %v574
  %591 = vst.msk [vmem:[%s5 + $0x18] sm:$0xff] %vm587, %v575
  %592 = vst.msk [vmem:[%s5 + $0x20] sm:$0xff] %vm587, %v576
  %593 = vst.msk [vmem:[%s5 + $0x28] sm:$0xff] %vm587, %v577
  %594 = vst.msk [vmem:[%s5 + $0x30] sm:$0xff] %vm587, %v578
  %595 = vst.msk [vmem:[%s5 + $0x38] sm:$0xff] %vm587, %v579
  %596 = vst.msk [vmem:[%s5 + $0x40] sm:$0xff] %vm587, %v580
  %597 = vst.msk [vmem:[%s5 + $0x48] sm:$0xff] %vm587, %v581
  %598 = vst.msk [vmem:[%s5 + $0x50] sm:$0xff] %vm587, %v582
  %599 = vst.msk [vmem:[%s5 + $0x58] sm:$0xff] %vm587, %v583
  %600 = vst.msk [vmem:[%s5 + $0x60] sm:$0xff] %vm587, %v584
  %601 = vst.msk [vmem:[%s5 + $0x68] sm:$0xff] %vm587, %v585
  %602 = vst.msk [vmem:[%s5 + $0x70] sm:$0xff] %vm587, %v586
  // Predicated region
  $region22: #{cnn_forward.2} parent=0 // pred_check
    _
  $region23: #{cnn_forward.2} parent=0 // pred_check_branch
    %604 = sbr.rel (0) target = $region25
  $region24: #{cnn_forward.2} parent=0 // pred_region
    _
  $region25: #{cnn_forward.2} parent=0 // pred_fallthru
    _
  // Predicated region
  $region26: #{cnn_forward.2} parent=0 // pred_check
    _
  $region27: #{cnn_forward.2} parent=0 // pred_check_branch
    %606 = sbr.rel (0) target = $region29
  $region28: #{cnn_forward.2} parent=0 // pred_region
    _
  $region29: #{cnn_forward.2} parent=0 // pred_fallthru
    _

// kernel: cnn_forward.3
$region0: #{cnn_forward.3}
  #allocation0 [shape = 'u32[]', space=smem, size = 0x4, offset = 0x4, fixed_abs, tag = 'smem constant byte address 0x4 - core index']
  #allocation1 [shape = 'u32[144,128]{1,0:T(1,128)}', space=vmem, size = 0x12000, scoped, tag = 'internal scratch']
  %s0 = inlined_call_operand.vmem [shape: f32[8,768], index: 0, kind: input, shape index: {}]
  %s1 = inlined_call_operand.vmem [shape: f32[768,48], index: 1, kind: input, shape index: {}]
  %s2 = inlined_call_operand.vmem [shape: f32[1,48], index: 2, kind: input, shape index: {}]
  %s3 = inlined_call_operand.vmem [shape: f32[1,48], index: 3, kind: input, shape index: {}]
  %s4 = inlined_call_operand.vmem [shape: f32[1,48], index: 4, kind: input, shape index: {}]
  %s5 = inlined_call_operand.vmem [shape: f32[48,32], index: 5, kind: input, shape index: {}]
  %s6 = inlined_call_operand.vmem [shape: f32[1,32], index: 6, kind: input, shape index: {}]
  %s7 = inlined_call_operand.vmem [shape: f32[32,3], index: 7, kind: input, shape index: {}]
  %s8 = inlined_call_operand.vmem [shape: f32[1,3], index: 8, kind: input, shape index: {}]
  %s9 = inlined_call_operand.hbm [shape: f32[2,3], index: 9, kind: output, shape index: {}]
  %s10 = sld [smem:[#allocation0]]
  $region46: #{cnn_forward.3} parent=0
    _
  %s12 = ssub.s32 1, %s10
  %s13 = scalar_select 0, %s12, %s10
  $region1: #{cnn_forward.3} parent=0
    #allocation2 [shape = 'u8[1024]{0}', space=vmem, size = 0x400, scoped, tag = 'output window, operand 0, single buffered']
    #allocation3 [shape = 's32[1]{0}', space=sflag, size = 0x4, scoped, tag = 'scoped memory for cnn_forward.3']
    %14 = vsyncpa [#allocation3], 0
    // Predicated region
    $region2: #{cnn_forward.3} parent=1 // pred_check
      _
    $region3: #{cnn_forward.3} parent=1 // pred_check_branch
      %16 = sbr.rel (0) target = $region5
    $region4: #{cnn_forward.3} parent=1 // pred_region
      _
    $region5: #{cnn_forward.3} parent=1 // pred_fallthru
      _
    // Predicated region
    $region6: #{cnn_forward.3} parent=1 // pred_check
      _
    $region7: #{cnn_forward.3} parent=1 // pred_check_branch
      %18 = sbr.rel (0) target = $region9
    $region8: #{cnn_forward.3} parent=1 // pred_region
      _
    $region9: #{cnn_forward.3} parent=1 // pred_fallthru
      _
    // Predicated region
    $region10: #{cnn_forward.3} parent=1 // pred_check
      _
    $region11: #{cnn_forward.3} parent=1 // pred_check_branch
      %20 = sbr.rel (0) target = $region13
    $region12: #{cnn_forward.3} parent=1 // pred_region
      _
    $region13: #{cnn_forward.3} parent=1 // pred_fallthru
      _
    // Predicated region
    $region14: #{cnn_forward.3} parent=1 // pred_check
      _
    $region15: #{cnn_forward.3} parent=1 // pred_check_branch
      %22 = sbr.rel (0) target = $region17
    $region16: #{cnn_forward.3} parent=1 // pred_region
      _
    $region17: #{cnn_forward.3} parent=1 // pred_fallthru
      _
    // Predicated region
    $region18: #{cnn_forward.3} parent=1 // pred_check
      _
    $region19: #{cnn_forward.3} parent=1 // pred_check_branch
      %24 = sbr.rel (0) target = $region21
    $region20: #{cnn_forward.3} parent=1 // pred_region
      _
    $region21: #{cnn_forward.3} parent=1 // pred_fallthru
      _
    // Predicated region
    $region22: #{cnn_forward.3} parent=1 // pred_check
      _
    $region23: #{cnn_forward.3} parent=1 // pred_check_branch
      %26 = sbr.rel (0) target = $region25
    $region24: #{cnn_forward.3} parent=1 // pred_region
      _
    $region25: #{cnn_forward.3} parent=1 // pred_fallthru
      _
    // Predicated region
    $region26: #{cnn_forward.3} parent=1 // pred_check
      _
    $region27: #{cnn_forward.3} parent=1 // pred_check_branch
      %28 = sbr.rel (0) target = $region29
    $region28: #{cnn_forward.3} parent=1 // pred_region
      _
    $region29: #{cnn_forward.3} parent=1 // pred_fallthru
      _
    // Predicated region
    $region30: #{cnn_forward.3} parent=1 // pred_check
      _
    $region31: #{cnn_forward.3} parent=1 // pred_check_branch
      %30 = sbr.rel (0) target = $region33
    $region32: #{cnn_forward.3} parent=1 // pred_region
      _
    $region33: #{cnn_forward.3} parent=1 // pred_fallthru
      _
    // Predicated region
    $region34: #{cnn_forward.3} parent=1 // pred_check
      _
    $region35: #{cnn_forward.3} parent=1 // pred_check_branch
      %32 = sbr.rel (0) target = $region37
    $region36: #{cnn_forward.3} parent=1 // pred_region
      _
    $region37: #{cnn_forward.3} parent=1 // pred_fallthru
      _
    %v33 = vld [vmem:[%s0] sm:$0xff]
    %v34 = vld [vmem:[%s0 + $0x8] sm:$0xff]
    %v35 = vld [vmem:[%s0 + $0x10] sm:$0xff]
    %v36 = vld [vmem:[%s0 + $0x18] sm:$0xff]
    %v37 = vld [vmem:[%s0 + $0x20] sm:$0xff]
    %v38 = vld [vmem:[%s0 + $0x28] sm:$0xff]
    %v39 = vld [vmem:[%s1] sm:$0xff]
    %v40 = vld [vmem:[%s1 + $0x8] sm:$0xff]
    %v41 = vld [vmem:[%s1 + $0x10] sm:$0xff]
    %v42 = vld [vmem:[%s1 + $0x18] sm:$0xff]
    %v43 = vld [vmem:[%s1 + $0x20] sm:$0xff]
    %v44 = vld [vmem:[%s1 + $0x28] sm:$0xff]
    %v45 = vld [vmem:[%s1 + $0x30] sm:$0xff]
    %v46 = vld [vmem:[%s1 + $0x38] sm:$0xff]
    %v47 = vld [vmem:[%s1 + $0x40] sm:$0xff]
    %v48 = vld [vmem:[%s1 + $0x48] sm:$0xff]
    %v49 = vld [vmem:[%s1 + $0x50] sm:$0xff]
    %v50 = vld [vmem:[%s1 + $0x58] sm:$0xff]
    %v51 = vld [vmem:[%s1 + $0x60] sm:$0xff]
    %v52 = vld [vmem:[%s1 + $0x68] sm:$0xff]
    %v53 = vld [vmem:[%s1 + $0x70] sm:$0xff]
    %v54 = vld [vmem:[%s1 + $0x78] sm:$0xff]
    %v55 = vld [vmem:[%s1 + $0x80] sm:$0xff]
    %v56 = vld [vmem:[%s1 + $0x88] sm:$0xff]
    %v57 = vld [vmem:[%s1 + $0x90] sm:$0xff]
    %v58 = vld [vmem:[%s1 + $0x98] sm:$0xff]
    %v59 = vld [vmem:[%s1 + $0xa0] sm:$0xff]
    %v60 = vld [vmem:[%s1 + $0xa8] sm:$0xff]
    %v61 = vld [vmem:[%s1 + $0xb0] sm:$0xff]
    %v62 = vld [vmem:[%s1 + $0xb8] sm:$0xff]
    %v63 = vld [vmem:[%s1 + $0xc0] sm:$0xff]
    %v64 = vld [vmem:[%s1 + $0xc8] sm:$0xff]
    %v65 = vld [vmem:[%s1 + $0xd0] sm:$0xff]
    %v66 = vld [vmem:[%s1 + $0xd8] sm:$0xff]
    %v67 = vld [vmem:[%s1 + $0xe0] sm:$0xff]
    %v68 = vld [vmem:[%s1 + $0xe8] sm:$0xff]
    %v69 = vld [vmem:[%s1 + $0xf0] sm:$0xff]
    %v70 = vld [vmem:[%s1 + $0xf8] sm:$0xff]
    %v71 = vld [vmem:[%s1 + $0x100] sm:$0xff]
    %v72 = vld [vmem:[%s1 + $0x108] sm:$0xff]
    %v73 = vld [vmem:[%s1 + $0x110] sm:$0xff]
    %v74 = vld [vmem:[%s1 + $0x118] sm:$0xff]
    %v75 = vld [vmem:[%s1 + $0x120] sm:$0xff]
    %v76 = vld [vmem:[%s1 + $0x128] sm:$0xff]
    %v77 = vld [vmem:[%s1 + $0x130] sm:$0xff]
    %v78 = vld [vmem:[%s1 + $0x138] sm:$0xff]
    %v79 = vld [vmem:[%s1 + $0x140] sm:$0xff]
    %v80 = vld [vmem:[%s1 + $0x148] sm:$0xff]
    %v81 = vld [vmem:[%s1 + $0x150] sm:$0xff]
    %v82 = vld [vmem:[%s1 + $0x158] sm:$0xff]
    %v83 = vld [vmem:[%s1 + $0x160] sm:$0xff]
    %v84 = vld [vmem:[%s1 + $0x168] sm:$0xff]
    %v85 = vld [vmem:[%s1 + $0x170] sm:$0xff]
    %v86 = vld [vmem:[%s1 + $0x178] sm:$0xff]
    %v87 = vld [vmem:[%s1 + $0x180] sm:$0xff]
    %v88 = vld [vmem:[%s1 + $0x188] sm:$0xff]
    %v89 = vld [vmem:[%s1 + $0x190] sm:$0xff]
    %v90 = vld [vmem:[%s1 + $0x198] sm:$0xff]
    %v91 = vld [vmem:[%s1 + $0x1a0] sm:$0xff]
    %v92 = vld [vmem:[%s1 + $0x1a8] sm:$0xff]
    %v93 = vld [vmem:[%s1 + $0x1b0] sm:$0xff]
    %v94 = vld [vmem:[%s1 + $0x1b8] sm:$0xff]
    %v95 = vld [vmem:[%s1 + $0x1c0] sm:$0xff]
    %v96 = vld [vmem:[%s1 + $0x1c8] sm:$0xff]
    %v97 = vld [vmem:[%s1 + $0x1d0] sm:$0xff]
    %v98 = vld [vmem:[%s1 + $0x1d8] sm:$0xff]
    %v99 = vld [vmem:[%s1 + $0x1e0] sm:$0xff]
    %v100 = vld [vmem:[%s1 + $0x1e8] sm:$0xff]
    %v101 = vld [vmem:[%s1 + $0x1f0] sm:$0xff]
    %v102 = vld [vmem:[%s1 + $0x1f8] sm:$0xff]
    %v103 = vld [vmem:[%s1 + $0x200] sm:$0xff]
    %v104 = vld [vmem:[%s1 + $0x208] sm:$0xff]
    %v105 = vld [vmem:[%s1 + $0x210] sm:$0xff]
    %v106 = vld [vmem:[%s1 + $0x218] sm:$0xff]
    %v107 = vld [vmem:[%s1 + $0x220] sm:$0xff]
    %v108 = vld [vmem:[%s1 + $0x228] sm:$0xff]
    %v109 = vld [vmem:[%s1 + $0x230] sm:$0xff]
    %v110 = vld [vmem:[%s1 + $0x238] sm:$0xff]
    %v111 = vld [vmem:[%s1 + $0x240] sm:$0xff]
    %v112 = vld [vmem:[%s1 + $0x248] sm:$0xff]
    %v113 = vld [vmem:[%s1 + $0x250] sm:$0xff]
    %v114 = vld [vmem:[%s1 + $0x258] sm:$0xff]
    %v115 = vld [vmem:[%s1 + $0x260] sm:$0xff]
    %v116 = vld [vmem:[%s1 + $0x268] sm:$0xff]
    %v117 = vld [vmem:[%s1 + $0x270] sm:$0xff]
    %v118 = vld [vmem:[%s1 + $0x278] sm:$0xff]
    %v119 = vld [vmem:[%s1 + $0x280] sm:$0xff]
    %v120 = vld [vmem:[%s1 + $0x288] sm:$0xff]
    %v121 = vld [vmem:[%s1 + $0x290] sm:$0xff]
    %v122 = vld [vmem:[%s1 + $0x298] sm:$0xff]
    %v123 = vld [vmem:[%s1 + $0x2a0] sm:$0xff]
    %v124 = vld [vmem:[%s1 + $0x2a8] sm:$0xff]
    %v125 = vld [vmem:[%s1 + $0x2b0] sm:$0xff]
    %v126 = vld [vmem:[%s1 + $0x2b8] sm:$0xff]
    %v127 = vld [vmem:[%s1 + $0x2c0] sm:$0xff]
    %v128 = vld [vmem:[%s1 + $0x2c8] sm:$0xff]
    %v129 = vld [vmem:[%s1 + $0x2d0] sm:$0xff]
    %v130 = vld [vmem:[%s1 + $0x2d8] sm:$0xff]
    %v131 = vld [vmem:[%s1 + $0x2e0] sm:$0xff]
    %v132 = vld [vmem:[%s1 + $0x2e8] sm:$0xff]
    %v133 = vld [vmem:[%s1 + $0x2f0] sm:$0xff]
    %v134 = vld [vmem:[%s1 + $0x2f8] sm:$0xff]
    %135 = vmatprep.subr.mxu0 0.0
    %136 = vmatpush1.msra.mxu0 %v39
    %137 = vmatprep.subr.mxu0 0.0
    %138 = vmatpush1.msra.mxu0 %v40
    %139 = vmatprep.subr.mxu0 0.0
    %140 = vmatpush1.msra.mxu0 %v41
    %141 = vmatprep.subr.mxu0 0.0
    %142 = vmatpush1.msra.mxu0 %v42
    %143 = vmatprep.subr.mxu0 0.0
    %144 = vmatpush1.msra.mxu0 %v43
    %145 = vmatprep.subr.mxu0 0.0
    %146 = vmatpush1.msra.mxu0 %v44
    %147 = vmatprep.subr.mxu0 0.0
    %148 = vmatpush1.msra.mxu0 %v45
    %149 = vmatprep.subr.mxu0 0.0
    %150 = vmatpush1.msra.mxu0 %v46
    %151 = vmatprep.subr.mxu0 0.0
    %152 = vmatpush1.msra.mxu0 %v47
    %153 = vmatprep.subr.mxu0 0.0
    %154 = vmatpush1.msra.mxu0 %v48
    %155 = vmatprep.subr.mxu0 0.0
    %156 = vmatpush1.msra.mxu0 %v49
    %157 = vmatprep.subr.mxu0 0.0
    %158 = vmatpush1.msra.mxu0 %v50
    %159 = vmatprep.subr.mxu0 0.0
    %160 = vmatpush1.msra.mxu0 %v51
    %161 = vmatprep.subr.mxu0 0.0
    %162 = vmatpush1.msra.mxu0 %v52
    %163 = vmatprep.subr.mxu0 0.0
    %164 = vmatpush1.msra.mxu0 %v53
    %165 = vmatprep.subr.mxu0 0.0
    %166 = vmatpush1.msra.mxu0 %v54
    %167 = vmatprep.subr.mxu0 0.0
    %168 = vmatpush1.msra.mxu0 %v55
    %169 = vmatprep.subr.mxu0 0.0
    %170 = vmatpush1.msra.mxu0 %v56
    %171 = vmatprep.subr.mxu0 0.0
    %172 = vmatpush1.msra.mxu0 %v57
    %173 = vmatprep.subr.mxu0 0.0
    %174 = vmatpush1.msra.mxu0 %v58
    %175 = vmatprep.subr.mxu0 0.0
    %176 = vmatpush1.msra.mxu0 %v59
    %177 = vmatprep.subr.mxu0 0.0
    %178 = vmatpush1.msra.mxu0 %v60
    %179 = vmatprep.subr.mxu0 0.0
    %180 = vmatpush1.msra.mxu0 %v61
    %181 = vmatprep.subr.mxu0 0.0
    %182 = vmatpush1.msra.mxu0 %v62
    %183 = vmatprep.subr.mxu0 0.0
    %184 = vmatpush1.msra.mxu0 %v63
    %185 = vmatprep.subr.mxu0 0.0
    %186 = vmatpush1.msra.mxu0 %v64
    %187 = vmatprep.subr.mxu0 0.0
    %188 = vmatpush1.msra.mxu0 %v65
    %189 = vmatprep.subr.mxu0 0.0
    %190 = vmatpush1.msra.mxu0 %v66
    %191 = vmatprep.subr.mxu0 0.0
    %192 = vmatpush1.msra.mxu0 %v67
    %193 = vmatprep.subr.mxu0 0.0
    %194 = vmatpush1.msra.mxu0 %v68
    %195 = vmatprep.subr.mxu0 0.0
    %196 = vmatpush1.msra.mxu0 %v69
    %197 = vmatprep.subr.mxu0 0.0
    %198 = vmatpush1.msra.mxu0 %v70
    %199 = vmatprep.mubr.f32.mxu0 %v34
    %200 = vmatmul.mubr.f32.gmra.mrb[0].mxu0 %v33
    %v201 = vpop.f32.mrb[0].mxu0
    %v202 = vadd.f32 0.0, %v201
    %v203 = vpop.f32.mrb[0].mxu0
    %204 = vdwg.mxu0
    %205 = vmatprep.subr.mxu0 0.0
    %206 = vmatpush1.msra.mxu0 %v71
    %207 = vmatprep.subr.mxu0 0.0
    %208 = vmatpush1.msra.mxu0 %v72
    %209 = vmatprep.subr.mxu0 0.0
    %210 = vmatpush1.msra.mxu0 %v73
    %211 = vmatprep.subr.mxu0 0.0
    %212 = vmatpush1.msra.mxu0 %v74
    %213 = vmatprep.subr.mxu0 0.0
    %214 = vmatpush1.msra.mxu0 %v75
    %215 = vmatprep.subr.mxu0 0.0
    %216 = vmatpush1.msra.mxu0 %v76
    %217 = vmatprep.subr.mxu0 0.0
    %218 = vmatpush1.msra.mxu0 %v77
    %219 = vmatprep.subr.mxu0 0.0
    %220 = vmatpush1.msra.mxu0 %v78
    %221 = vmatprep.subr.mxu0 0.0
    %222 = vmatpush1.msra.mxu0 %v79
    %223 = vmatprep.subr.mxu0 0.0
    %224 = vmatpush1.msra.mxu0 %v80
    %225 = vmatprep.subr.mxu0 0.0
    %226 = vmatpush1.msra.mxu0 %v81
    %227 = vmatprep.subr.mxu0 0.0
    %228 = vmatpush1.msra.mxu0 %v82
    %229 = vmatprep.subr.mxu0 0.0
    %230 = vmatpush1.msra.mxu0 %v83
    %231 = vmatprep.subr.mxu0 0.0
    %232 = vmatpush1.msra.mxu0 %v84
    %233 = vmatprep.subr.mxu0 0.0
    %234 = vmatpush1.msra.mxu0 %v85
    %235 = vmatprep.subr.mxu0 0.0
    %236 = vmatpush1.msra.mxu0 %v86
    %237 = vmatprep.subr.mxu0 0.0
    %238 = vmatpush1.msra.mxu0 %v87
    %239 = vmatprep.subr.mxu0 0.0
    %240 = vmatpush1.msra.mxu0 %v88
    %241 = vmatprep.subr.mxu0 0.0
    %242 = vmatpush1.msra.mxu0 %v89
    %243 = vmatprep.subr.mxu0 0.0
    %244 = vmatpush1.msra.mxu0 %v90
    %245 = vmatprep.subr.mxu0 0.0
    %246 = vmatpush1.msra.mxu0 %v91
    %247 = vmatprep.subr.mxu0 0.0
    %248 = vmatpush1.msra.mxu0 %v92
    %249 = vmatprep.subr.mxu0 0.0
    %250 = vmatpush1.msra.mxu0 %v93
    %251 = vmatprep.subr.mxu0 0.0
    %252 = vmatpush1.msra.mxu0 %v94
    %253 = vmatprep.subr.mxu0 0.0
    %254 = vmatpush1.msra.mxu0 %v95
    %255 = vmatprep.subr.mxu0 0.0
    %256 = vmatpush1.msra.mxu0 %v96
    %257 = vmatprep.subr.mxu0 0.0
    %258 = vmatpush1.msra.mxu0 %v97
    %259 = vmatprep.subr.mxu0 0.0
    %260 = vmatpush1.msra.mxu0 %v98
    %261 = vmatprep.subr.mxu0 0.0
    %262 = vmatpush1.msra.mxu0 %v99
    %263 = vmatprep.subr.mxu0 0.0
    %264 = vmatpush1.msra.mxu0 %v100
    %265 = vmatprep.subr.mxu0 0.0
    %266 = vmatpush1.msra.mxu0 %v101
    %267 = vmatprep.subr.mxu0 0.0
    %268 = vmatpush1.msra.mxu0 %v102
    %269 = vmatprep.mubr.f32.mxu0 %v36
    %270 = vmatmul.mubr.f32.gmra.mrb[0].mxu0 %v35
    %v271 = vpop.f32.mrb[0].mxu0
    %v272 = vadd.f32 %v202, %v271
    %v273 = vpop.f32.mrb[0].mxu0
    %274 = vdwg.mxu0
    %275 = vmatprep.subr.mxu0 0.0
    %276 = vmatpush1.msra.mxu0 %v103
    %277 = vmatprep.subr.mxu0 0.0
    %278 = vmatpush1.msra.mxu0 %v104
    %279 = vmatprep.subr.mxu0 0.0
    %280 = vmatpush1.msra.mxu0 %v105
    %281 = vmatprep.subr.mxu0 0.0
    %282 = vmatpush1.msra.mxu0 %v106
    %283 = vmatprep.subr.mxu0 0.0
    %284 = vmatpush1.msra.mxu0 %v107
    %285 = vmatprep.subr.mxu0 0.0
    %286 = vmatpush1.msra.mxu0 %v108
    %287 = vmatprep.subr.mxu0 0.0
    %288 = vmatpush1.msra.mxu0 %v109
    %289 = vmatprep.subr.mxu0 0.0
    %290 = vmatpush1.msra.mxu0 %v110
    %291 = vmatprep.subr.mxu0 0.0
    %292 = vmatpush1.msra.mxu0 %v111
    %293 = vmatprep.subr.mxu0 0.0
    %294 = vmatpush1.msra.mxu0 %v112
    %295 = vmatprep.subr.mxu0 0.0
    %296 = vmatpush1.msra.mxu0 %v113
    %297 = vmatprep.subr.mxu0 0.0
    %298 = vmatpush1.msra.mxu0 %v114
    %299 = vmatprep.subr.mxu0 0.0
    %300 = vmatpush1.msra.mxu0 %v115
    %301 = vmatprep.subr.mxu0 0.0
    %302 = vmatpush1.msra.mxu0 %v116
    %303 = vmatprep.subr.mxu0 0.0
    %304 = vmatpush1.msra.mxu0 %v117
    %305 = vmatprep.subr.mxu0 0.0
    %306 = vmatpush1.msra.mxu0 %v118
    %307 = vmatprep.subr.mxu0 0.0
    %308 = vmatpush1.msra.mxu0 %v119
    %309 = vmatprep.subr.mxu0 0.0
    %310 = vmatpush1.msra.mxu0 %v120
    %311 = vmatprep.subr.mxu0 0.0
    %312 = vmatpush1.msra.mxu0 %v121
    %313 = vmatprep.subr.mxu0 0.0
    %314 = vmatpush1.msra.mxu0 %v122
    %315 = vmatprep.subr.mxu0 0.0
    %316 = vmatpush1.msra.mxu0 %v123
    %317 = vmatprep.subr.mxu0 0.0
    %318 = vmatpush1.msra.mxu0 %v124
    %319 = vmatprep.subr.mxu0 0.0
    %320 = vmatpush1.msra.mxu0 %v125
    %321 = vmatprep.subr.mxu0 0.0
    %322 = vmatpush1.msra.mxu0 %v126
    %323 = vmatprep.subr.mxu0 0.0
    %324 = vmatpush1.msra.mxu0 %v127
    %325 = vmatprep.subr.mxu0 0.0
    %326 = vmatpush1.msra.mxu0 %v128
    %327 = vmatprep.subr.mxu0 0.0
    %328 = vmatpush1.msra.mxu0 %v129
    %329 = vmatprep.subr.mxu0 0.0
    %330 = vmatpush1.msra.mxu0 %v130
    %331 = vmatprep.subr.mxu0 0.0
    %332 = vmatpush1.msra.mxu0 %v131
    %333 = vmatprep.subr.mxu0 0.0
    %334 = vmatpush1.msra.mxu0 %v132
    %335 = vmatprep.subr.mxu0 0.0
    %336 = vmatpush1.msra.mxu0 %v133
    %337 = vmatprep.subr.mxu0 0.0
    %338 = vmatpush1.msra.mxu0 %v134
    %339 = vmatprep.mubr.f32.mxu0 %v38
    %340 = vmatmul.mubr.f32.gmra.mrb[0].mxu0 %v37
    %v341 = vpop.f32.mrb[0].mxu0
    %v342 = vadd.f32 %v272, %v341
    %v343 = vpop.f32.mrb[0].mxu0
    %344 = vdwg.mxu0
    %v346 = vrot.slane %v342, 2
    %v348 = vmax.f32 %v342, %v346
    %v350 = vrot.slane %v348, 4
    %v352 = vmax.f32 %v348, %v350
    %v353 = vld [vmem:[%s2] sm:$0x1]
    %v355 = vlaneseq
    %v356 = vshrl.u32 %v355, 7
    %v357 = vsub.s32 0, %v356
    %v358 = vrot.slane %v353, %v357
    %v360 = vadd.f32 %v352, %v358
    %v361 = vmax.f32 %v360, 0.0
    %v362 = vld [vmem:[%s3] sm:$0x1]
    %v364 = vlaneseq
    %v365 = vshrl.u32 %v364, 7
    %v366 = vsub.s32 0, %v365
    %v367 = vrot.slane %v362, %v366
    %v369 = vmul.f32 %v361, %v367
    %v370 = vld [vmem:[%s4] sm:$0x1]
    %v372 = vlaneseq
    %v373 = vshrl.u32 %v372, 7
    %v374 = vsub.s32 0, %v373
    %v375 = vrot.slane %v370, %v374
    %v377 = vadd.f32 %v369, %v375
    %v378 = vld [vmem:[%s5] sm:$0xff]
    %v379 = vld [vmem:[%s5 + $0x8] sm:$0xff]
    %v380 = vld [vmem:[%s5 + $0x10] sm:$0xff]
    %v381 = vld [vmem:[%s5 + $0x18] sm:$0xff]
    %v382 = vld [vmem:[%s5 + $0x20] sm:$0xff]
    %v383 = vld [vmem:[%s5 + $0x28] sm:$0xff]
    %v384 = vld [vmem:[%s6] sm:$0x1]
    %v386 = vlaneseq
    %v387 = vshrl.u32 %v386, 7
    %v388 = vsub.s32 0, %v387
    %v389 = vrot.slane %v384, %v388
    %vm391 = vcmask 392192
    %v393 = vsel %vm391, %v377, 0
    %395 = vmatprep.subr.mxu0 0.0
    %396 = vmatpush1.msra.mxu0 %v378
    %397 = vmatprep.subr.mxu0 0.0
    %398 = vmatpush1.msra.mxu0 %v379
    %399 = vmatprep.subr.mxu0 0.0
    %400 = vmatpush1.msra.mxu0 %v380
    %401 = vmatprep.subr.mxu0 0.0
    %402 = vmatpush1.msra.mxu0 %v381
    %403 = vmatprep.subr.mxu0 0.0
    %404 = vmatpush1.msra.mxu0 %v382
    %405 = vmatprep.subr.mxu0 0.0
    %406 = vmatpush1.msra.mxu0 %v383
    %407 = vmatprep.subr.mxu0 0.0
    %408 = vmatpush1.msra.mxu0 0.0
    %409 = vmatprep.subr.mxu0 0.0
    %410 = vmatpush1.msra.mxu0 0.0
    %411 = vmatprep.subr.mxu0 0.0
    %412 = vmatpush1.msra.mxu0 0.0
    %413 = vmatprep.subr.mxu0 0.0
    %414 = vmatpush1.msra.mxu0 0.0
    %415 = vmatprep.subr.mxu0 0.0
    %416 = vmatpush1.msra.mxu0 0.0
    %417 = vmatprep.subr.mxu0 0.0
    %418 = vmatpush1.msra.mxu0 0.0
    %419 = vmatprep.subr.mxu0 0.0
    %420 = vmatpush1.msra.mxu0 0.0
    %421 = vmatprep.subr.mxu0 0.0
    %422 = vmatpush1.msra.mxu0 0.0
    %423 = vmatprep.subr.mxu0 0.0
    %424 = vmatpush1.msra.mxu0 0.0
    %425 = vmatprep.subr.mxu0 0.0
    %426 = vmatpush1.msra.mxu0 0.0
    %427 = vmatprep.subr.mxu0 0.0
    %428 = vmatpush1.msra.mxu0 0.0
    %429 = vmatprep.subr.mxu0 0.0
    %430 = vmatpush1.msra.mxu0 0.0
    %431 = vmatprep.subr.mxu0 0.0
    %432 = vmatpush1.msra.mxu0 0.0
    %433 = vmatprep.subr.mxu0 0.0
    %434 = vmatpush1.msra.mxu0 0.0
    %435 = vmatprep.subr.mxu0 0.0
    %436 = vmatpush1.msra.mxu0 0.0
    %437 = vmatprep.subr.mxu0 0.0
    %438 = vmatpush1.msra.mxu0 0.0
    %439 = vmatprep.subr.mxu0 0.0
    %440 = vmatpush1.msra.mxu0 0.0
    %441 = vmatprep.subr.mxu0 0.0
    %442 = vmatpush1.msra.mxu0 0.0
    %443 = vmatprep.subr.mxu0 0.0
    %444 = vmatpush1.msra.mxu0 0.0
    %445 = vmatprep.subr.mxu0 0.0
    %446 = vmatpush1.msra.mxu0 0.0
    %447 = vmatprep.subr.mxu0 0.0
    %448 = vmatpush1.msra.mxu0 0.0
    %449 = vmatprep.subr.mxu0 0.0
    %450 = vmatpush1.msra.mxu0 0.0
    %451 = vmatprep.subr.mxu0 0.0
    %452 = vmatpush1.msra.mxu0 0.0
    %453 = vmatprep.subr.mxu0 0.0
    %454 = vmatpush1.msra.mxu0 0.0
    %455 = vmatprep.subr.mxu0 0.0
    %456 = vmatpush1.msra.mxu0 0.0
    %457 = vmatprep.subr.mxu0 0.0
    %458 = vmatpush1.msra.mxu0 0.0
    %459 = vmatprep.mubr.f32.mxu0 0.0
    %460 = vmatmul.mubr.f32.gmra.mrb[0].mxu0 %v393
    %v461 = vpop.f32.mrb[0].mxu0
    %v462 = vadd.f32 %v389, %v461
    %v463 = vpop.f32.mrb[0].mxu0
    %464 = vdwg.mxu0
    %v465 = vmax.f32 %v462, 0.0
    %v466 = vld [vmem:[%s7] sm:$0xff]
    %v467 = vld [vmem:[%s7 + $0x8] sm:$0xff]
    %v468 = vld [vmem:[%s7 + $0x10] sm:$0xff]
    %v469 = vld [vmem:[%s7 + $0x18] sm:$0xff]
    %v470 = vld [vmem:[%s8] sm:$0x1]
    %v472 = vlaneseq
    %v473 = vshrl.u32 %v472, 7
    %v474 = vsub.s32 0, %v473
    %v475 = vrot.slane %v470, %v474
    %vm477 = vcmask 261120
    %v479 = vsel %vm477, %v465, 0
    %481 = vmatprep.subr.mxu0 0.0
    %482 = vmatpush1.msra.mxu0 %v466
    %483 = vmatprep.subr.mxu0 0.0
    %484 = vmatpush1.msra.mxu0 %v467
    %485 = vmatprep.subr.mxu0 0.0
    %486 = vmatpush1.msra.mxu0 %v468
    %487 = vmatprep.subr.mxu0 0.0
    %488 = vmatpush1.msra.mxu0 %v469
    %489 = vmatprep.subr.mxu0 0.0
    %490 = vmatpush1.msra.mxu0 0.0
    %491 = vmatprep.subr.mxu0 0.0
    %492 = vmatpush1.msra.mxu0 0.0
    %493 = vmatprep.subr.mxu0 0.0
    %494 = vmatpush1.msra.mxu0 0.0
    %495 = vmatprep.subr.mxu0 0.0
    %496 = vmatpush1.msra.mxu0 0.0
    %497 = vmatprep.subr.mxu0 0.0
    %498 = vmatpush1.msra.mxu0 0.0
    %499 = vmatprep.subr.mxu0 0.0
    %500 = vmatpush1.msra.mxu0 0.0
    %501 = vmatprep.subr.mxu0 0.0
    %502 = vmatpush1.msra.mxu0 0.0
    %503 = vmatprep.subr.mxu0 0.0
    %504 = vmatpush1.msra.mxu0 0.0
    %505 = vmatprep.subr.mxu0 0.0
    %506 = vmatpush1.msra.mxu0 0.0
    %507 = vmatprep.subr.mxu0 0.0
    %508 = vmatpush1.msra.mxu0 0.0
    %509 = vmatprep.subr.mxu0 0.0
    %510 = vmatpush1.msra.mxu0 0.0
    %511 = vmatprep.subr.mxu0 0.0
    %512 = vmatpush1.msra.mxu0 0.0
    %513 = vmatprep.subr.mxu0 0.0
    %514 = vmatpush1.msra.mxu0 0.0
    %515 = vmatprep.subr.mxu0 0.0
    %516 = vmatpush1.msra.mxu0 0.0
    %517 = vmatprep.subr.mxu0 0.0
    %518 = vmatpush1.msra.mxu0 0.0
    %519 = vmatprep.subr.mxu0 0.0
    %520 = vmatpush1.msra.mxu0 0.0
    %521 = vmatprep.subr.mxu0 0.0
    %522 = vmatpush1.msra.mxu0 0.0
    %523 = vmatprep.subr.mxu0 0.0
    %524 = vmatpush1.msra.mxu0 0.0
    %525 = vmatprep.subr.mxu0 0.0
    %526 = vmatpush1.msra.mxu0 0.0
    %527 = vmatprep.subr.mxu0 0.0
    %528 = vmatpush1.msra.mxu0 0.0
    %529 = vmatprep.subr.mxu0 0.0
    %530 = vmatpush1.msra.mxu0 0.0
    %531 = vmatprep.subr.mxu0 0.0
    %532 = vmatpush1.msra.mxu0 0.0
    %533 = vmatprep.subr.mxu0 0.0
    %534 = vmatpush1.msra.mxu0 0.0
    %535 = vmatprep.subr.mxu0 0.0
    %536 = vmatpush1.msra.mxu0 0.0
    %537 = vmatprep.subr.mxu0 0.0
    %538 = vmatpush1.msra.mxu0 0.0
    %539 = vmatprep.subr.mxu0 0.0
    %540 = vmatpush1.msra.mxu0 0.0
    %541 = vmatprep.subr.mxu0 0.0
    %542 = vmatpush1.msra.mxu0 0.0
    %543 = vmatprep.subr.mxu0 0.0
    %544 = vmatpush1.msra.mxu0 0.0
    %545 = vmatprep.mubr.f32.mxu0 0.0
    %546 = vmatmul.mubr.f32.gmra.mrb[0].mxu0 %v479
    %v547 = vpop.f32.mrb[0].mxu0
    %v548 = vadd.f32 %v475, %v547
    %v549 = vpop.f32.mrb[0].mxu0
    %550 = vdwg.mxu0
    %vm551 = vcmask 17408
    %552 = vst.msk [vmem:[#allocation2] sm:$0x3] %vm551, %v548
    // Predicated region
    $region38: #{cnn_forward.3} parent=1 // pred_check
      _
    $region39: #{cnn_forward.3} parent=1 // pred_check_branch
      %554 = sbr.rel (0) target = $region41
    $region40: #{cnn_forward.3} parent=1 // pred_region
      %s556 = ssub.s32 32, 32
      %557 = vsyncadd [#allocation3], %s556
      %s559 = sshll.u32 [#allocation2], 4
      %s560 = int_to_ptr.vmem [resolvable:$true] %s559
      %562 = dma.vmem_to_hbm [thread:$0]  %s560, 32, %s9, [#allocation3]
    $region41: #{cnn_forward.3} parent=1 // pred_fallthru
      _
    // Predicated region
    $region42: #{cnn_forward.3} parent=1 // pred_check
      _
    $region43: #{cnn_forward.3} parent=1 // pred_check_branch
      %564 = sbr.rel (0) target = $region45
    $region44: #{cnn_forward.3} parent=1 // pred_region
      %565 = dma.done [#allocation3], 32
    $region45: #{cnn_forward.3} parent=1 // pred_fallthru
      _
    %566 = vsyncpa [#allocation3], 1

</llo_original>
